<compile_context>
chip_gen: v5e
topology: v5e:2x2
jax: 0.10.0
libtpu: 0.0.40
codegen_flags: <defaults>
</compile_context>

<pallas_src>
import functools

import jax
import jax.numpy as jnp
from jax import lax
from jax.experimental import pallas as pl
from jax.experimental.pallas import tpu as pltpu


# ---------------------------------------------------------------------------
# Kernel 1 (per batch element): fused
#   x -> Conv1x1(no bias)+BN+ReLU -> Encoding -> BN1d(K)+ReLU -> Mean(k)
#     -> fc gate (1 + sigmoid(Linear))  and  se head (Linear, lane-padded)
# ---------------------------------------------------------------------------
def _encmodule_kernel(x_ref, wenc_ref, esc_ref, ebi_ref, c_ref, s2_ref,
                      s2cc_ref, ksc_ref, kbi_ref, wfc_ref, bfc_ref,
                      wse_ref, bse_ref, g1_ref, se_ref):
    x = x_ref[0]                                               # (N, C) f32

    # encoding[0:3] = Conv1x1 (no bias) + folded BN + ReLU (bf16 MXU, f32 acc).
    h = jnp.dot(x.astype(jnp.bfloat16), wenc_ref[...],
                preferred_element_type=jnp.float32)            # (N, C)
    h = jnp.maximum(h * esc_ref[...] + ebi_ref[...], 0.0)
    hb = h.astype(jnp.bfloat16)

    c = c_ref[...]                                             # (K, C) f32

    # scaled squared L2 distance (algebraic expansion); xx kept in f32.
    xx = jnp.sum(h * h, axis=1, keepdims=True)                 # (N, 1)
    xc = lax.dot_general(hb, c.astype(jnp.bfloat16),
                         (((1,), (1,)), ((), ())),
                         preferred_element_type=jnp.float32)   # (N, K)
    dist = (xx - 2.0 * xc) * s2_ref[...] + s2cc_ref[...]       # (N, K)

    # softmax over codewords (dim=2 in the torch code).
    m = jnp.max(dist, axis=1, keepdims=True)
    p = jnp.exp(dist - m)
    a = p * pl.reciprocal(jnp.sum(p, axis=1, keepdims=True), approx=True)

    # aggregation: e[k,d] = sum_n a[n,k](h[n,d]-c[k,d]) = (a^T h)[k,d] - asum_k c[k,d]
    atx = lax.dot_general(a.astype(jnp.bfloat16), hb,
                          (((0,), (0,)), ((), ())),
                          preferred_element_type=jnp.float32)  # (K, C)
    ones_n1 = jnp.ones((a.shape[0], 1), jnp.float32)
    asum = lax.dot_general(a, ones_n1, (((0,), (0,)), ((), ())),
                           preferred_element_type=jnp.float32)  # (K, 1)
    e = atx - asum * c                                          # (K, C)

    # folded BatchNorm1d(K) + ReLU, then Mean(dim=1) over codewords.
    e = jnp.maximum(e * ksc_ref[...] + kbi_ref[...], 0.0)
    en = jnp.mean(e, axis=0, keepdims=True)                     # (1, C) f32
    enb = en.astype(jnp.bfloat16)

    # fc gate: emit (1 + sigmoid(Linear(en))); reciprocal on the EUP slot.
    g = jnp.dot(enb, wfc_ref[...],
                preferred_element_type=jnp.float32) + bfc_ref[...]
    g1_ref[0] = 1.0 + pl.reciprocal(1.0 + jnp.exp(-g), approx=True)

    # se head (outputs lane-padded to a multiple of 128; sliced in the wrapper).
    se_ref[0] = jnp.dot(enb, wse_ref[...],
                        preferred_element_type=jnp.float32) + bse_ref[...]


def encoding_fc_se(x_flat, p):
    B, N, C = x_flat.shape
    K = p["codewords"].shape[0]
    NP = p["wse_pad"].shape[1]
    return pl.pallas_call(
        _encmodule_kernel,
        out_shape=(jax.ShapeDtypeStruct((B, 1, C), jnp.float32),   # 1 + gamma
                   jax.ShapeDtypeStruct((B, 1, NP), jnp.float32)),  # se (padded)
        grid=(B,),
        in_specs=[
            pl.BlockSpec((1, N, C), lambda b: (b, 0, 0)),   # x (original input)
            pl.BlockSpec((C, C), lambda b: (0, 0)),         # w_enc (bf16)
            pl.BlockSpec((1, C), lambda b: (0, 0)),         # bn_enc scale
            pl.BlockSpec((1, C), lambda b: (0, 0)),         # bn_enc bias
            pl.BlockSpec((K, C), lambda b: (0, 0)),         # codewords
            pl.BlockSpec((1, K), lambda b: (0, 0)),         # s^2
            pl.BlockSpec((1, K), lambda b: (0, 0)),         # s^2 * ||c||^2
            pl.BlockSpec((K, 1), lambda b: (0, 0)),         # bn1d scale
            pl.BlockSpec((K, 1), lambda b: (0, 0)),         # bn1d bias
            pl.BlockSpec((C, C), lambda b: (0, 0)),         # wfc (bf16)
            pl.BlockSpec((1, C), lambda b: (0, 0)),         # bfc
            pl.BlockSpec((C, NP), lambda b: (0, 0)),        # wse padded (bf16)
            pl.BlockSpec((1, NP), lambda b: (0, 0)),        # bse padded
        ],
        out_specs=(pl.BlockSpec((1, 1, C), lambda b: (b, 0, 0)),
                   pl.BlockSpec((1, 1, NP), lambda b: (b, 0, 0))),
        compiler_params=pltpu.CompilerParams(dimension_semantics=("parallel",)),
    )(x_flat, p["w_enc"], p["bn_enc_scale"], p["bn_enc_bias"], p["codewords"],
      p["s2"], p["s2cc"], p["bn1d_scale"], p["bn1d_bias"],
      p["wfc"], p["bfc"], p["wse_pad"], p["bse_pad"])


# ---------------------------------------------------------------------------
# Kernel 2: SE gating on the ORIGINAL input:  relu_(x + x*gamma) = relu(x*(1+g))
# ---------------------------------------------------------------------------
def _se_gate_kernel(x_ref, g1_ref, o_ref):
    o_ref[...] = jnp.maximum(x_ref[...] * g1_ref[...], 0.0)


def _row_tile(n, max_tile=128):
    # Largest tile <= max_tile that divides n and is sublane-friendly.
    for t in range(min(max_tile, n), 0, -1):
        if n % t == 0 and t % 8 == 0:
            return t
    return n


def se_gate(x_flat, gamma1):
    B, N, C = x_flat.shape
    tn = _row_tile(N)
    return pl.pallas_call(
        _se_gate_kernel,
        out_shape=jax.ShapeDtypeStruct((B, N, C), jnp.float32),
        grid=(B, N // tn),
        in_specs=[
            pl.BlockSpec((1, tn, C), lambda b, i: (b, i, 0)),
            pl.BlockSpec((1, 1, C), lambda b, i: (b, 0, 0)),
        ],
        out_specs=pl.BlockSpec((1, tn, C), lambda b, i: (b, i, 0)),
        compiler_params=pltpu.CompilerParams(
            dimension_semantics=("parallel", "parallel")),
    )(x_flat, gamma1)


# ---------------------------------------------------------------------------
# EncModule forward (glue + kernels)
# ---------------------------------------------------------------------------
def enc_module_forward(x_nchw, params):
    B, C, H, W = x_nchw.shape
    N = H * W
    # NCHW -> (B, H*W, C): same row order as x.view(B, C, -1).transpose(1, 2).
    x_flat = jnp.transpose(x_nchw, (0, 2, 3, 1)).reshape(B, N, C)

    gamma1, se_pad = encoding_fc_se(x_flat, params)   # (B,1,C), (B,1,NP)
    out_flat = se_gate(x_flat, gamma1)                # (B, N, C)

    out_nchw = jnp.transpose(out_flat.reshape(B, H, W, C), (0, 3, 1, 2))
    se_out = se_pad[:, 0, :params["nclass"]]
    return out_nchw, se_out


# ---------------------------------------------------------------------------
# Deterministic synthetic parameters (shapes dictated by the module __init__)
# ---------------------------------------------------------------------------
def init_params(key, in_channels, nclass, ncodes=32):
    C, K = in_channels, ncodes
    NP = ((nclass + 127) // 128) * 128
    eps = 1e-5
    ks = jax.random.split(key, 15)

    def uni(k, shape, lo, hi):
        return jax.random.uniform(k, shape, jnp.float32, lo, hi)

    def fold_bn(kg, kb, km, kv, shape):
        g = uni(kg, shape, 0.5, 1.5)
        b = uni(kb, shape, -0.1, 0.1)
        rm = uni(km, shape, -0.1, 0.1)
        rv = uni(kv, shape, 0.5, 1.5)
        sc = g / jnp.sqrt(rv + eps)
        return sc, b - rm * sc

    w_enc = uni(ks[0], (C, C), -0.05, 0.05)
    bn_enc_scale, bn_enc_bias = fold_bn(ks[1], ks[2], ks[3], ks[4], (1, C))

    std1 = 1.0 / float((K * C) ** 0.5)
    codewords = uni(ks[5], (K, C), -std1, std1)
    scale = uni(ks[6], (K,), -1.0, 0.0)
    s2 = (scale * scale).reshape(1, K)
    s2cc = s2 * jnp.sum(codewords * codewords, axis=1).reshape(1, K)

    bn1d_scale, bn1d_bias = fold_bn(ks[7], ks[8], ks[9], ks[10], (K, 1))

    wfc = uni(ks[11], (C, C), -0.04, 0.04)       # Linear weights stored (in,out)
    bfc = uni(ks[12], (1, C), -0.04, 0.04)
    wse = uni(ks[13], (C, nclass), -0.04, 0.04)
    bse = uni(ks[14], (1, nclass), -0.04, 0.04)
    wse_pad = jnp.zeros((C, NP), jnp.float32).at[:, :nclass].set(wse)
    bse_pad = jnp.zeros((1, NP), jnp.float32).at[:, :nclass].set(bse)

    return dict(
        w_enc=w_enc.astype(jnp.bfloat16),
        bn_enc_scale=bn_enc_scale, bn_enc_bias=bn_enc_bias,
        codewords=codewords, s2=s2, s2cc=s2cc,
        bn1d_scale=bn1d_scale, bn1d_bias=bn1d_bias,
        wfc=wfc.astype(jnp.bfloat16), bfc=bfc,
        wse_pad=wse_pad.astype(jnp.bfloat16), bse_pad=bse_pad,
        nclass=nclass)


if __name__ == "__main__":
    key = jax.random.PRNGKey(0)
    kx, kp = jax.random.split(key)

    B, C, H, W = 2, 128, 16, 16      # small NCHW input; channels on lanes
    nclass = 8

    x = jax.random.normal(kx, (B, C, H, W), jnp.float32)
    params = init_params(kp, C, nclass)

    fwd = jax.jit(functools.partial(enc_module_forward, params=params))
    out_map, out_se = fwd(x)
    jax.block_until_ready((out_map, out_se))

    assert out_map.shape == (B, C, H, W)
    assert out_se.shape == (B, nclass)
    assert jnp.all(jnp.isfinite(out_map)) and jnp.all(jnp.isfinite(out_se))
    assert float(out_map.min()) >= 0.0          # relu_ output must be nonnegative
    print("KERNEL_OK")
</pallas_src>

<mosaic_0001>
module attributes {stable_mosaic.version = 11 : i64} {
  func.func @_se_gate_kernel(%arg0: i32, %arg1: i32, %arg2: memref<1x128x128xf32, #tpu.memory_space<vmem>>, %arg3: memref<1x1x128xf32, #tpu.memory_space<vmem>>, %arg4: memref<1x128x128xf32, #tpu.memory_space<vmem>>) attributes {dimension_semantics = [#tpu.dimension_semantics<parallel>, #tpu.dimension_semantics<parallel>], iteration_bounds = array<i64: 2, 2>, scalar_prefetch = 0 : i64, scratch_operands = 0 : i64, tpu.core_type = #tpu.core_type<tc>, window_params = [{transform_indices = @transform_0, window_bounds = array<i64: 1, 128, 128>}, {transform_indices = @transform_1, window_bounds = array<i64: 1, 1, 128>}, {transform_indices = @transform_2, window_bounds = array<i64: 1, 128, 128>}]} {
    %c0 = arith.constant 0 : index
    %c0_0 = arith.constant 0 : index
    %c0_1 = arith.constant 0 : index
    %0 = vector.load %arg2[%c0, %c0_0, %c0_1] : memref<1x128x128xf32, #tpu.memory_space<vmem>>, vector<1x128x128xf32>
    %c0_2 = arith.constant 0 : index
    %c0_3 = arith.constant 0 : index
    %c0_4 = arith.constant 0 : index
    %1 = vector.load %arg3[%c0_2, %c0_3, %c0_4] : memref<1x1x128xf32, #tpu.memory_space<vmem>>, vector<1x1x128xf32>
    %2 = vector.broadcast %1 : vector<1x1x128xf32> to vector<1x128x128xf32>
    %3 = arith.mulf %0, %2 : vector<1x128x128xf32>
    %cst = arith.constant 0.000000e+00 : f32
    %4 = vector.broadcast %cst : f32 to vector<1x128x128xf32>
    %5 = arith.maximumf %3, %4 : vector<1x128x128xf32>
    %c0_5 = arith.constant 0 : index
    %c0_6 = arith.constant 0 : index
    %c0_7 = arith.constant 0 : index
    %6 = vector.load %arg4[%c0_5, %c0_6, %c0_7] : memref<1x128x128xf32, #tpu.memory_space<vmem>>, vector<1x128x128xf32>
    tpu.vector_store %arg4[%c0_5, %c0_6, %c0_7], %5 {strides = array<i32>} : memref<1x128x128xf32, #tpu.memory_space<vmem>>, vector<1x128x128xf32>,
    return
  }
  func.func @transform_0(%arg0: i32, %arg1: i32) -> (i32, i32, i32) {
    %c0_i32 = arith.constant 0 : i32
    %c0_i32_0 = arith.constant 0 : i32
    return %arg0, %arg1, %c0_i32 : i32, i32, i32
  }
  func.func @transform_1(%arg0: i32, %arg1: i32) -> (i32, i32, i32) {
    %c0_i32 = arith.constant 0 : i32
    %c0_i32_0 = arith.constant 0 : i32
    %c0_i32_1 = arith.constant 0 : i32
    return %arg0, %c0_i32, %c0_i32_0 : i32, i32, i32
  }
  func.func @transform_2(%arg0: i32, %arg1: i32) -> (i32, i32, i32) {
    %c0_i32 = arith.constant 0 : i32
    %c0_i32_0 = arith.constant 0 : i32
    return %arg0, %arg1, %c0_i32 : i32, i32, i32
  }
}

module attributes {stable_mosaic.version = 11 : i64} {
  func.func @_encmodule_kernel(%arg0: i32, %arg1: memref<1x256x128xf32, #tpu.memory_space<vmem>>, %arg2: memref<128x128xbf16, #tpu.memory_space<vmem>>, %arg3: memref<1x128xf32, #tpu.memory_space<vmem>>, %arg4: memref<1x128xf32, #tpu.memory_space<vmem>>, %arg5: memref<32x128xf32, #tpu.memory_space<vmem>>, %arg6: memref<1x32xf32, #tpu.memory_space<vmem>>, %arg7: memref<1x32xf32, #tpu.memory_space<vmem>>, %arg8: memref<32x1xf32, #tpu.memory_space<vmem>>, %arg9: memref<32x1xf32, #tpu.memory_space<vmem>>, %arg10: memref<128x128xbf16, #tpu.memory_space<vmem>>, %arg11: memref<1x128xf32, #tpu.memory_space<vmem>>, %arg12: memref<128x128xbf16, #tpu.memory_space<vmem>>, %arg13: memref<1x128xf32, #tpu.memory_space<vmem>>, %arg14: memref<1x1x128xf32, #tpu.memory_space<vmem>>, %arg15: memref<1x1x128xf32, #tpu.memory_space<vmem>>) attributes {dimension_semantics = [#tpu.dimension_semantics<parallel>], iteration_bounds = array<i64: 2>, scalar_prefetch = 0 : i64, scratch_operands = 0 : i64, tpu.core_type = #tpu.core_type<tc>, window_params = [{transform_indices = @transform_0, window_bounds = array<i64: 1, 256, 128>}, {pipeline_mode = #tpu.pipeline_mode<synchronous>, transform_indices = @transform_1, window_bounds = array<i64: 128, 128>}, {pipeline_mode = #tpu.pipeline_mode<synchronous>, transform_indices = @transform_2, window_bounds = array<i64: 1, 128>}, {pipeline_mode = #tpu.pipeline_mode<synchronous>, transform_indices = @transform_3, window_bounds = array<i64: 1, 128>}, {pipeline_mode = #tpu.pipeline_mode<synchronous>, transform_indices = @transform_4, window_bounds = array<i64: 32, 128>}, {pipeline_mode = #tpu.pipeline_mode<synchronous>, transform_indices = @transform_5, window_bounds = array<i64: 1, 32>}, {pipeline_mode = #tpu.pipeline_mode<synchronous>, transform_indices = @transform_6, window_bounds = array<i64: 1, 32>}, {pipeline_mode = #tpu.pipeline_mode<synchronous>, transform_indices = @transform_7, window_bounds = array<i64: 32, 1>}, {pipeline_mode = #tpu.pipeline_mode<synchronous>, transform_indices = @transform_8, window_bounds = array<i64: 32, 1>}, {pipeline_mode = #tpu.pipeline_mode<synchronous>, transform_indices = @transform_9, window_bounds = array<i64: 128, 128>}, {pipeline_mode = #tpu.pipeline_mode<synchronous>, transform_indices = @transform_10, window_bounds = array<i64: 1, 128>}, {pipeline_mode = #tpu.pipeline_mode<synchronous>, transform_indices = @transform_11, window_bounds = array<i64: 128, 128>}, {pipeline_mode = #tpu.pipeline_mode<synchronous>, transform_indices = @transform_12, window_bounds = array<i64: 1, 128>}, {transform_indices = @transform_13, window_bounds = array<i64: 1, 1, 128>}, {transform_indices = @transform_14, window_bounds = array<i64: 1, 1, 128>}]} {
    %c0 = arith.constant 0 : index
    %c0_0 = arith.constant 0 : index
    %c0_1 = arith.constant 0 : index
    %0 = vector.load %arg1[%c0, %c0_0, %c0_1] : memref<1x256x128xf32, #tpu.memory_space<vmem>>, vector<1x256x128xf32>
    %1 = vector.shape_cast %0 : vector<1x256x128xf32> to vector<256x128xf32>
    %2 = arith.truncf %1 : vector<256x128xf32> to vector<256x128xbf16>
    %c0_2 = arith.constant 0 : index
    %c0_3 = arith.constant 0 : index
    %3 = vector.load %arg2[%c0_2, %c0_3] : memref<128x128xbf16, #tpu.memory_space<vmem>>, vector<128x128xbf16>
    %cst = arith.constant dense<0.000000e+00> : vector<256x128xf32>
    %4 = tpu.matmul %2, %3, %cst {dimension_numbers = #tpu.dot_dimension_numbers<[1], [0], [0], [1], [0, 0, 1, 1], [], []>} : vector<256x128xbf16>, vector<128x128xbf16>, vector<256x128xf32> -> vector<256x128xf32>
    %c0_4 = arith.constant 0 : index
    %c0_5 = arith.constant 0 : index
    %5 = vector.load %arg3[%c0_4, %c0_5] : memref<1x128xf32, #tpu.memory_space<vmem>>, vector<1x128xf32>
    %6 = vector.broadcast %5 : vector<1x128xf32> to vector<256x128xf32>
    %7 = arith.mulf %4, %6 : vector<256x128xf32>
    %c0_6 = arith.constant 0 : index
    %c0_7 = arith.constant 0 : index
    %8 = vector.load %arg4[%c0_6, %c0_7] : memref<1x128xf32, #tpu.memory_space<vmem>>, vector<1x128xf32>
    %9 = vector.broadcast %8 : vector<1x128xf32> to vector<256x128xf32>
    %10 = arith.addf %7, %9 : vector<256x128xf32>
    %cst_8 = arith.constant 0.000000e+00 : f32
    %11 = vector.broadcast %cst_8 : f32 to vector<256x128xf32>
    %12 = arith.maximumf %10, %11 : vector<256x128xf32>
    %13 = arith.truncf %12 : vector<256x128xf32> to vector<256x128xbf16>
    %c0_9 = arith.constant 0 : index
    %c0_10 = arith.constant 0 : index
    %14 = vector.load %arg5[%c0_9, %c0_10] : memref<32x128xf32, #tpu.memory_space<vmem>>, vector<32x128xf32>
    %15 = arith.mulf %12, %12 : vector<256x128xf32>
    %cst_11 = arith.constant dense<0.000000e+00> : vector<256xf32>
    %16 = vector.multi_reduction <add>, %15, %cst_11 [1] : vector<256x128xf32> to vector<256xf32>
    %17 = vector.shape_cast %16 : vector<256xf32> to vector<256x1xf32>
    %18 = arith.truncf %14 : vector<32x128xf32> to vector<32x128xbf16>
    %cst_12 = arith.constant dense<0.000000e+00> : vector<256x32xf32>
    %19 = tpu.matmul %13, %18, %cst_12 {dimension_numbers = #tpu.dot_dimension_numbers<[1], [1], [0], [0], [0, 0, 1, 0], [], []>} : vector<256x128xbf16>, vector<32x128xbf16>, vector<256x32xf32> -> vector<256x32xf32>
    %cst_13 = arith.constant 2.000000e+00 : f32
    %20 = vector.broadcast %cst_13 : f32 to vector<256x32xf32>
    %21 = arith.mulf %20, %19 : vector<256x32xf32>
    %22 = vector.broadcast %17 : vector<256x1xf32> to vector<256x32xf32>
    %23 = arith.subf %22, %21 : vector<256x32xf32>
    %c0_14 = arith.constant 0 : index
    %c0_15 = arith.constant 0 : index
    %24 = vector.load %arg6[%c0_14, %c0_15] : memref<1x32xf32, #tpu.memory_space<vmem>>, vector<1x32xf32>
    %25 = vector.broadcast %24 : vector<1x32xf32> to vector<256x32xf32>
    %26 = arith.mulf %23, %25 : vector<256x32xf32>
    %c0_16 = arith.constant 0 : index
    %c0_17 = arith.constant 0 : index
    %27 = vector.load %arg7[%c0_16, %c0_17] : memref<1x32xf32, #tpu.memory_space<vmem>>, vector<1x32xf32>
    %28 = vector.broadcast %27 : vector<1x32xf32> to vector<256x32xf32>
    %29 = arith.addf %26, %28 : vector<256x32xf32>
    %cst_18 = arith.constant dense<0xFF800000> : vector<256xf32>
    %30 = vector.multi_reduction <maximumf>, %29, %cst_18 [1] : vector<256x32xf32> to vector<256xf32>
    %31 = vector.shape_cast %30 : vector<256xf32> to vector<256x1xf32>
    %32 = vector.broadcast %31 : vector<256x1xf32> to vector<256x32xf32>
    %33 = arith.subf %29, %32 : vector<256x32xf32>
    %34 = math.exp %33 : vector<256x32xf32>
    %cst_19 = arith.constant dense<0.000000e+00> : vector<256xf32>
    %35 = vector.multi_reduction <add>, %34, %cst_19 [1] : vector<256x32xf32> to vector<256xf32>
    %36 = vector.shape_cast %35 : vector<256xf32> to vector<256x1xf32>
    %37 = tpu.reciprocal %36 {approx = true} : vector<256x1xf32> -> vector<256x1xf32>
    %38 = vector.broadcast %37 : vector<256x1xf32> to vector<256x32xf32>
    %39 = arith.mulf %34, %38 : vector<256x32xf32>
    %40 = arith.truncf %39 : vector<256x32xf32> to vector<256x32xbf16>
    %cst_20 = arith.constant dense<0.000000e+00> : vector<32x128xf32>
    %41 = tpu.matmul %40, %13, %cst_20 {dimension_numbers = #tpu.dot_dimension_numbers<[0], [0], [1], [1], [0, 1, 1, 1], [], []>} : vector<256x32xbf16>, vector<256x128xbf16>, vector<32x128xf32> -> vector<32x128xf32>
    %cst_21 = arith.constant 1.000000e+00 : f32
    %42 = vector.broadcast %cst_21 : f32 to vector<256x1xf32>
    %cst_22 = arith.constant dense<0.000000e+00> : vector<32x1xf32>
    %43 = tpu.matmul %39, %42, %cst_22 {dimension_numbers = #tpu.dot_dimension_numbers<[0], [0], [1], [1], [0, 1, 1, 1], [], []>} : vector<256x32xf32>, vector<256x1xf32>, vector<32x1xf32> -> vector<32x1xf32>
    %44 = vector.broadcast %43 : vector<32x1xf32> to vector<32x128xf32>
    %45 = arith.mulf %44, %14 : vector<32x128xf32>
    %46 = arith.subf %41, %45 : vector<32x128xf32>
    %c0_23 = arith.constant 0 : index
    %c0_24 = arith.constant 0 : index
    %47 = vector.load %arg8[%c0_23, %c0_24] : memref<32x1xf32, #tpu.memory_space<vmem>>, vector<32x1xf32>
    %48 = vector.broadcast %47 : vector<32x1xf32> to vector<32x128xf32>
    %49 = arith.mulf %46, %48 : vector<32x128xf32>
    %c0_25 = arith.constant 0 : index
    %c0_26 = arith.constant 0 : index
    %50 = vector.load %arg9[%c0_25, %c0_26] : memref<32x1xf32, #tpu.memory_space<vmem>>, vector<32x1xf32>
    %51 = vector.broadcast %50 : vector<32x1xf32> to vector<32x128xf32>
    %52 = arith.addf %49, %51 : vector<32x128xf32>
    %cst_27 = arith.constant 0.000000e+00 : f32
    %53 = vector.broadcast %cst_27 : f32 to vector<32x128xf32>
    %54 = arith.maximumf %52, %53 : vector<32x128xf32>
    %cst_28 = arith.constant dense<0.000000e+00> : vector<128xf32>
    %55 = vector.multi_reduction <add>, %54, %cst_28 [0] : vector<32x128xf32> to vector<128xf32>
    %56 = vector.shape_cast %55 : vector<128xf32> to vector<1x128xf32>
    %cst_29 = arith.constant 3.200000e+01 : f32
    %57 = vector.broadcast %cst_29 : f32 to vector<1x128xf32>
    %58 = arith.divf %56, %57 : vector<1x128xf32>
    %59 = arith.truncf %58 : vector<1x128xf32> to vector<1x128xbf16>
    %c0_30 = arith.constant 0 : index
    %c0_31 = arith.constant 0 : index
    %60 = vector.load %arg10[%c0_30, %c0_31] : memref<128x128xbf16, #tpu.memory_space<vmem>>, vector<128x128xbf16>
    %cst_32 = arith.constant dense<0.000000e+00> : vector<1x128xf32>
    %61 = tpu.matmul %59, %60, %cst_32 {dimension_numbers = #tpu.dot_dimension_numbers<[1], [0], [0], [1], [0, 0, 1, 1], [], []>} : vector<1x128xbf16>, vector<128x128xbf16>, vector<1x128xf32> -> vector<1x128xf32>
    %c0_33 = arith.constant 0 : index
    %c0_34 = arith.constant 0 : index
    %62 = vector.load %arg11[%c0_33, %c0_34] : memref<1x128xf32, #tpu.memory_space<vmem>>, vector<1x128xf32>
    %63 = arith.addf %61, %62 : vector<1x128xf32>
    %cst_35 = arith.constant 0.000000e+00 : f32
    %64 = vector.broadcast %cst_35 : f32 to vector<1x128xf32>
    %65 = arith.subf %64, %63 : vector<1x128xf32>
    %66 = math.exp %65 : vector<1x128xf32>
    %cst_36 = arith.constant 1.000000e+00 : f32
    %67 = vector.broadcast %cst_36 : f32 to vector<1x128xf32>
    %68 = arith.addf %67, %66 : vector<1x128xf32>
    %69 = tpu.reciprocal %68 {approx = true} : vector<1x128xf32> -> vector<1x128xf32>
    %cst_37 = arith.constant 1.000000e+00 : f32
    %70 = vector.broadcast %cst_37 : f32 to vector<1x128xf32>
    %71 = arith.addf %70, %69 : vector<1x128xf32>
    %c0_38 = arith.constant 0 : index
    %c0_39 = arith.constant 0 : index
    %c0_40 = arith.constant 0 : index
    %72 = vector.load %arg14[%c0_38, %c0_39, %c0_40] : memref<1x1x128xf32, #tpu.memory_space<vmem>>, vector<1x1x128xf32>
    %73 = vector.shape_cast %72 : vector<1x1x128xf32> to vector<1x128xf32>
    %74 = vector.shape_cast %71 : vector<1x128xf32> to vector<1x1x128xf32>
    tpu.vector_store %arg14[%c0_38, %c0_39, %c0_40], %74 {strides = array<i32>} : memref<1x1x128xf32, #tpu.memory_space<vmem>>, vector<1x1x128xf32>,
    %c0_41 = arith.constant 0 : index
    %c0_42 = arith.constant 0 : index
    %75 = vector.load %arg12[%c0_41, %c0_42] : memref<128x128xbf16, #tpu.memory_space<vmem>>, vector<128x128xbf16>
    %cst_43 = arith.constant dense<0.000000e+00> : vector<1x128xf32>
    %76 = tpu.matmul %59, %75, %cst_43 {dimension_numbers = #tpu.dot_dimension_numbers<[1], [0], [0], [1], [0, 0, 1, 1], [], []>} : vector<1x128xbf16>, vector<128x128xbf16>, vector<1x128xf32> -> vector<1x128xf32>
    %c0_44 = arith.constant 0 : index
    %c0_45 = arith.constant 0 : index
    %77 = vector.load %arg13[%c0_44, %c0_45] : memref<1x128xf32, #tpu.memory_space<vmem>>, vector<1x128xf32>
    %78 = arith.addf %76, %77 : vector<1x128xf32>
    %c0_46 = arith.constant 0 : index
    %c0_47 = arith.constant 0 : index
    %c0_48 = arith.constant 0 : index
    %79 = vector.load %arg15[%c0_46, %c0_47, %c0_48] : memref<1x1x128xf32, #tpu.memory_space<vmem>>, vector<1x1x128xf32>
    %80 = vector.shape_cast %79 : vector<1x1x128xf32> to vector<1x128xf32>
    %81 = vector.shape_cast %78 : vector<1x128xf32> to vector<1x1x128xf32>
    tpu.vector_store %arg15[%c0_46, %c0_47, %c0_48], %81 {strides = array<i32>} : memref<1x1x128xf32, #tpu.memory_space<vmem>>, vector<1x1x128xf32>,
    return
  }
  func.func @transform_0(%arg0: i32) -> (i32, i32, i32) {
    %c0_i32 = arith.constant 0 : i32
    %c0_i32_0 = arith.constant 0 : i32
    %c0_i32_1 = arith.constant 0 : i32
    return %arg0, %c0_i32, %c0_i32_0 : i32, i32, i32
  }
  func.func @transform_1(%arg0: i32) -> (i32, i32) {
    %c0_i32 = arith.constant 0 : i32
    %c0_i32_0 = arith.constant 0 : i32
    %c0_i32_1 = arith.constant 0 : i32
    return %c0_i32, %c0_i32_0 : i32, i32
  }
  func.func @transform_2(%arg0: i32) -> (i32, i32) {
    %c0_i32 = arith.constant 0 : i32
    %c0_i32_0 = arith.constant 0 : i32
    %c0_i32_1 = arith.constant 0 : i32
    return %c0_i32, %c0_i32_0 : i32, i32
  }
  func.func @transform_3(%arg0: i32) -> (i32, i32) {
    %c0_i32 = arith.constant 0 : i32
    %c0_i32_0 = arith.constant 0 : i32
    %c0_i32_1 = arith.constant 0 : i32
    return %c0_i32, %c0_i32_0 : i32, i32
  }
  func.func @transform_4(%arg0: i32) -> (i32, i32) {
    %c0_i32 = arith.constant 0 : i32
    %c0_i32_0 = arith.constant 0 : i32
    %c0_i32_1 = arith.constant 0 : i32
    return %c0_i32, %c0_i32_0 : i32, i32
  }
  func.func @transform_5(%arg0: i32) -> (i32, i32) {
    %c0_i32 = arith.constant 0 : i32
    %c0_i32_0 = arith.constant 0 : i32
    %c0_i32_1 = arith.constant 0 : i32
    return %c0_i32, %c0_i32_0 : i32, i32
  }
  func.func @transform_6(%arg0: i32) -> (i32, i32) {
    %c0_i32 = arith.constant 0 : i32
    %c0_i32_0 = arith.constant 0 : i32
    %c0_i32_1 = arith.constant 0 : i32
    return %c0_i32, %c0_i32_0 : i32, i32
  }
  func.func @transform_7(%arg0: i32) -> (i32, i32) {
    %c0_i32 = arith.constant 0 : i32
    %c0_i32_0 = arith.constant 0 : i32
    %c0_i32_1 = arith.constant 0 : i32
    return %c0_i32, %c0_i32_0 : i32, i32
  }
  func.func @transform_8(%arg0: i32) -> (i32, i32) {
    %c0_i32 = arith.constant 0 : i32
    %c0_i32_0 = arith.constant 0 : i32
    %c0_i32_1 = arith.constant 0 : i32
    return %c0_i32, %c0_i32_0 : i32, i32
  }
  func.func @transform_9(%arg0: i32) -> (i32, i32) {
    %c0_i32 = arith.constant 0 : i32
    %c0_i32_0 = arith.constant 0 : i32
    %c0_i32_1 = arith.constant 0 : i32
    return %c0_i32, %c0_i32_0 : i32, i32
  }
  func.func @transform_10(%arg0: i32) -> (i32, i32) {
    %c0_i32 = arith.constant 0 : i32
    %c0_i32_0 = arith.constant 0 : i32
    %c0_i32_1 = arith.constant 0 : i32
    return %c0_i32, %c0_i32_0 : i32, i32
  }
  func.func @transform_11(%arg0: i32) -> (i32, i32) {
    %c0_i32 = arith.constant 0 : i32
    %c0_i32_0 = arith.constant 0 : i32
    %c0_i32_1 = arith.constant 0 : i32
    return %c0_i32, %c0_i32_0 : i32, i32
  }
  func.func @transform_12(%arg0: i32) -> (i32, i32) {
    %c0_i32 = arith.constant 0 : i32
    %c0_i32_0 = arith.constant 0 : i32
    %c0_i32_1 = arith.constant 0 : i32
    return %c0_i32, %c0_i32_0 : i32, i32
  }
  func.func @transform_13(%arg0: i32) -> (i32, i32, i32) {
    %c0_i32 = arith.constant 0 : i32
    %c0_i32_0 = arith.constant 0 : i32
    %c0_i32_1 = arith.constant 0 : i32
    return %arg0, %c0_i32, %c0_i32_0 : i32, i32, i32
  }
  func.func @transform_14(%arg0: i32) -> (i32, i32, i32) {
    %c0_i32 = arith.constant 0 : i32
    %c0_i32_0 = arith.constant 0 : i32
    %c0_i32_1 = arith.constant 0 : i32
    return %arg0, %c0_i32, %c0_i32_0 : i32, i32, i32
  }
}

</mosaic_0001>

<llo_original>
// kernel: enc_module_forward.3
$region0: #{enc_module_forward.3}
  #allocation0 [shape = 'u32[]', space=smem, size = 0x4, offset = 0x4, fixed_abs, tag = 'smem constant byte address 0x4 - core index']
  #allocation1 [shape = 'u32[72,128]{1,0:T(1,128)}', space=vmem, size = 0x9000, scoped, tag = 'internal scratch']
  %s0 = inlined_call_operand.hbm [shape: f32[2,256,128], index: 0, kind: input, shape index: {}]
  %s1 = inlined_call_operand.vmem [shape: f32[2,1,128], index: 1, kind: input, shape index: {}]
  %s2 = inlined_call_operand.hbm [shape: f32[2,256,128], index: 2, kind: output, shape index: {}]
  %s3 = sld [smem:[#allocation0]]
  $region45: #{enc_module_forward.3} parent=0
    _
  %s5 = ssub.s32 1, %s3
  %s6 = scalar_select 0, %s5, %s3
  $region1: #{enc_module_forward.3} parent=0
    #allocation2 [shape = 'u8[131072]{0}', space=vmem, size = 0x20000, scoped, tag = 'input window, operand 0']
    #allocation3 [shape = 's32[2]{0}', space=sflag, size = 0x8, scoped, tag = 'scoped memory for enc_module_forward.3']
    #allocation4 [shape = 's32[2]{0}', space=sflag, size = 0x8, scoped, tag = 'scoped memory for enc_module_forward.3']
    #allocation5 [shape = 'u8[131072]{0}', space=vmem, size = 0x20000, scoped, tag = 'output window, operand 0']
    %7 = vsyncpa [#allocation3], 0
    %s8 = scalar_lea.sflag [#allocation3], 1
    %9 = vsyncpa %s8, 0
    %10 = vsyncpa [#allocation4], 0
    %s11 = scalar_lea.sflag [#allocation4], 1
    %12 = vsyncpa %s11, 0
    loop: start=0, step=1, limit=6
    $region2: #{enc_module_forward.3} parent=1 // loop_pre_header
      _
    $region3: #{enc_module_forward.3} parent=1 // loop_header
      %s14 = sphi 0, %s18
      %p15 = scmp.ge.s32.totalorder %s14, 6
      %s21 = sphi 0, %s33
      %s22 = sphi 0, %s29
      %s23 = sphi 0, %s21
      %s24 = sphi 0, %s22
      %s25 = sphi 0, %s23
      %s26 = sphi 0, %s24
      %s38 = sphi 0, %s40
      %s41 = sphi 0, %s38
      %s42 = sphi 0, %s41
      %s58 = sphi 0, %s42
      %s64 = sphi 0, %s66
      %s67 = sphi 0, %s64
      %s68 = sphi 0, %s67
      %s84 = sphi 0, %s68
      %s92 = sphi 0, %s94
      %s95 = sphi 0, %s92
      %s96 = sphi 0, %s95
      %s112 = sphi 0, %s96
    $region4: #{enc_module_forward.3} parent=1 // loop_header_branch
      %17 = sbr.rel (%p15) target = $region8
    $region5: #{enc_module_forward.3} parent=1 // loop_body
      %s19 = ssub.s32 %s14, 1
      %s20 = ssub.s32 %s14, 2
      %s27 = sadd.s32 1, %s22
      %p28 = scmp.ge.s32.totalorder %s27, 2
      %s29 = scalar_select %p28, 0, %s27
      %s30 = sadd.s32 1, %s21
      %s31 = scalar_select %p28, %s30, %s21
      %p32 = scmp.ge.s32.totalorder %s31, 2
      %s33 = scalar_select %p32, 0, %s31
      %s34 = ssub.s32 %s21, %s33
      %s35 = ssub.s32 %s22, %s29
      %s36 = sor.u32 %s34, %s35
      %p37 = scmp.eq.s32.totalorder %s36, 0
      %s39 = sadd.s32 %s38, 1
      %s40 = scalar_select %p37, %s38, %s39
      %p43 = pneg %p37
      %p44 = scmp.eq.s32.totalorder %s14, 3
      %p45 = por %p43, %p44
      %p46 = scmp.ne.s32.totalorder %s38, %s41
      %p47 = scmp.eq.s32.totalorder %s14, 0
      %p48 = por %p46, %p47
      %p49 = scmp.ne.s32.totalorder %s38, %s41
      %p50 = scmp.eq.s32.totalorder %s19, 3
      %p51 = por %p49, %p50
      %p52 = scmp.ne.s32.totalorder %s41, %s42
      %p53 = scmp.eq.s32.totalorder %s19, 0
      %p54 = por %p52, %p53
      %p55 = scmp.ne.s32.totalorder %s41, %s42
      %p56 = scmp.eq.s32.totalorder %s20, 3
      %p57 = por %p55, %p56
      %p59 = scmp.ne.s32.totalorder %s42, %s58
      %p60 = scmp.eq.s32.totalorder %s20, 0
      %p61 = por %p59, %p60
      %s62 = ssub.s32 %s21, %s33
      %p63 = scmp.eq.s32.totalorder %s62, 0
      %s65 = sadd.s32 %s64, 1
      %s66 = scalar_select %p63, %s64, %s65
      %p69 = pneg %p63
      %p70 = scmp.eq.s32.totalorder %s14, 3
      %p71 = por %p69, %p70
      %p72 = scmp.ne.s32.totalorder %s64, %s67
      %p73 = scmp.eq.s32.totalorder %s14, 0
      %p74 = por %p72, %p73
      %p75 = scmp.ne.s32.totalorder %s64, %s67
      %p76 = scmp.eq.s32.totalorder %s19, 3
      %p77 = por %p75, %p76
      %p78 = scmp.ne.s32.totalorder %s67, %s68
      %p79 = scmp.eq.s32.totalorder %s19, 0
      %p80 = por %p78, %p79
      %p81 = scmp.ne.s32.totalorder %s67, %s68
      %p82 = scmp.eq.s32.totalorder %s20, 3
      %p83 = por %p81, %p82
      %p85 = scmp.ne.s32.totalorder %s68, %s84
      %p86 = scmp.eq.s32.totalorder %s20, 0
      %p87 = por %p85, %p86
      %s88 = ssub.s32 %s21, %s33
      %s89 = ssub.s32 %s22, %s29
      %s90 = sor.u32 %s88, %s89
      %p91 = scmp.eq.s32.totalorder %s90, 0
      %s93 = sadd.s32 %s92, 1
      %s94 = scalar_select %p91, %s92, %s93
      %p97 = pneg %p91
      %p98 = scmp.eq.s32.totalorder %s14, 3
      %p99 = por %p97, %p98
      %p100 = scmp.ne.s32.totalorder %s92, %s95
      %p101 = scmp.eq.s32.totalorder %s14, 0
      %p102 = por %p100, %p101
      %p103 = scmp.ne.s32.totalorder %s92, %s95
      %p104 = scmp.eq.s32.totalorder %s19, 3
      %p105 = por %p103, %p104
      %p106 = scmp.ne.s32.totalorder %s95, %s96
      %p107 = scmp.eq.s32.totalorder %s19, 0
      %p108 = por %p106, %p107
      %p109 = scmp.ne.s32.totalorder %s95, %s96
      %p110 = scmp.eq.s32.totalorder %s20, 3
      %p111 = por %p109, %p110
      %p113 = scmp.ne.s32.totalorder %s96, %s112
      %p114 = scmp.eq.s32.totalorder %s20, 0
      %p115 = por %p113, %p114
      %p116 = scmp.le.s32.totalorder 1, %s14
      %p117 = scmp.lt.s32.totalorder %s14, 5
      %p118 = pnand %p116, %p117
      %p119 = pneg %p118
      // Predicated region
      $region9: #{enc_module_forward.3} parent=5 // pred_check
        _
      $region10: #{enc_module_forward.3} parent=5 // pred_check_branch
        %121 = sbr.rel (%p118) target = $region12
      $region11: #{enc_module_forward.3} parent=5 // pred_region
        %s122 = ssub.s32 %s14, 1
      $region12: #{enc_module_forward.3} parent=5 // pred_fallthru
        _
      %p123 = scmp.lt.s32.totalorder %s14, 4
      // Predicated region
      $region13: #{enc_module_forward.3} parent=5 // pred_check
        %p124 = pneg %p123
      $region14: #{enc_module_forward.3} parent=5 // pred_check_branch
        %126 = sbr.rel (%p124) target = $region16
      $region15: #{enc_module_forward.3} parent=5 // pred_region
        // Predicated region
        $region17: #{enc_module_forward.3} parent=15 // pred_check
          %p127 = pneg %p48
        $region18: #{enc_module_forward.3} parent=15 // pred_check_branch
          %129 = sbr.rel (%p127) target = $region20
        $region19: #{enc_module_forward.3} parent=15 // pred_region
          %s130 = sand.u32 %s38, 1
          %s131 = scalar_lea.sflag [#allocation3], %s130
          %s132 = sand.u32 %s38, 1
          %s133 = smul.addr %s132, 128
          %s134 = scalar_lea.vmem [#allocation2], %s133
          %s135 = smul.u32 16, %s22
          %137 = vsyncadd %s131, 0
          %s138 = smul.addr %s21, 32
          %s139 = sadd.s32 %s135, %s138
          %s140 = smul.addr %s139, 8
          %s141 = scalar_lea.hbm %s0, %s140
          %s142 = sshll.u32 %s141, 4
          %s143 = int_to_ptr.hbm [resolvable:$true] %s142
          %s144 = sshll.u32 %s134, 4
          %s145 = int_to_ptr.vmem [resolvable:$true] %s144
          %150 = dma.hbm_to_vmem [thread:$0]  %s143, 2048, %s145, %s131, 128, 128, 8
        $region20: #{enc_module_forward.3} parent=15 // pred_fallthru
          _
        // Predicated region
        $region21: #{enc_module_forward.3} parent=15 // pred_check
          %p151 = pneg %p74
        $region22: #{enc_module_forward.3} parent=15 // pred_check_branch
          %153 = sbr.rel (%p151) target = $region24
        $region23: #{enc_module_forward.3} parent=15 // pred_region
          %p154 = scmp.lt.s32.totalorder %s21, 1
          %s155 = scalar_select %p154, %s21, 1
          %s156 = scalar_lea.vmem %s1, %s155
        $region24: #{enc_module_forward.3} parent=15 // pred_fallthru
          _
      $region16: #{enc_module_forward.3} parent=5 // pred_fallthru
        _
      %p157 = scmp.le.s32.totalorder 1, %s14
      %p158 = scmp.lt.s32.totalorder %s14, 5
      %p159 = pnand %p157, %p158
      %p160 = pneg %p159
      // Predicated region
      $region25: #{enc_module_forward.3} parent=5 // pred_check
        _
      $region26: #{enc_module_forward.3} parent=5 // pred_check_branch
        %162 = sbr.rel (%p159) target = $region28
      $region27: #{enc_module_forward.3} parent=5 // pred_region
        %s163 = ssub.s32 %s14, 1
        %s164 = sand.u32 %s41, 1
        %s165 = scalar_lea.sflag [#allocation3], %s164
        %s166 = sand.u32 %s41, 1
        %s167 = smul.addr %s166, 128
        %s168 = scalar_lea.vmem [#allocation2], %s167
        // Predicated region
        $region29: #{enc_module_forward.3} parent=27 // pred_check
          %p169 = pneg %p54
        $region30: #{enc_module_forward.3} parent=27 // pred_check_branch
          %171 = sbr.rel (%p169) target = $region32
        $region31: #{enc_module_forward.3} parent=27 // pred_region
          %173 = dma.done %s165, 2048
        $region32: #{enc_module_forward.3} parent=27 // pred_fallthru
          _
        %s174 = sand.u32 %s41, 1
        %s175 = scalar_lea.sflag [#allocation3], %s174
        %s176 = sand.u32 %s41, 1
        %s177 = smul.addr %s176, 128
        %s178 = scalar_lea.vmem [#allocation2], %s177
        %p179 = pneg %p54
        %p180 = pneg %p51
        %p181 = scmp.lt.s32.totalorder %s23, 1
        %s182 = scalar_select %p181, %s23, 1
        %s183 = scalar_lea.vmem %s1, %s182
        %p184 = pneg %p80
        %p185 = pneg %p77
        %p186 = pneg %p108
        %p187 = pneg %p105
        %s188 = sand.u32 %s95, 1
        %s189 = scalar_lea.sflag [#allocation4], %s188
        %s190 = sand.u32 %s95, 1
        %s191 = smul.addr %s190, 128
        %s192 = scalar_lea.vmem [#allocation5], %s191
        %s193 = smul.u32 16, %s24
        %p194 = scmp.lt.s32.totalorder %s23, 1
        %s195 = scalar_select %p194, %s23, 1
        %s196 = scalar_lea.vmem %s1, %s195
        %s197 = smul.u32 16, %s24
        %v198 = vld [vmem:[%s168] sm:$0xff]
        %v199 = vld [vmem:[%s168 + $0x8] sm:$0xff]
        %v200 = vld [vmem:[%s168 + $0x10] sm:$0xff]
        %v201 = vld [vmem:[%s168 + $0x18] sm:$0xff]
        %v202 = vld [vmem:[%s168 + $0x20] sm:$0xff]
        %v203 = vld [vmem:[%s168 + $0x28] sm:$0xff]
        %v204 = vld [vmem:[%s168 + $0x30] sm:$0xff]
        %v205 = vld [vmem:[%s168 + $0x38] sm:$0xff]
        %v206 = vld [vmem:[%s168 + $0x40] sm:$0xff]
        %v207 = vld [vmem:[%s168 + $0x48] sm:$0xff]
        %v208 = vld [vmem:[%s168 + $0x50] sm:$0xff]
        %v209 = vld [vmem:[%s168 + $0x58] sm:$0xff]
        %v210 = vld [vmem:[%s168 + $0x60] sm:$0xff]
        %v211 = vld [vmem:[%s168 + $0x68] sm:$0xff]
        %v212 = vld [vmem:[%s168 + $0x70] sm:$0xff]
        %v213 = vld [vmem:[%s168 + $0x78] sm:$0xff]
        %v214 = vld [vmem:[%s196] sm:$0x1]
        %v216 = vperm.slane %v214, 0
        %v218 = vmul.f32 %v198, %v216
        %v219 = vmul.f32 %v199, %v216
        %v220 = vmul.f32 %v200, %v216
        %v221 = vmul.f32 %v201, %v216
        %v222 = vmul.f32 %v202, %v216
        %v223 = vmul.f32 %v203, %v216
        %v224 = vmul.f32 %v204, %v216
        %v225 = vmul.f32 %v205, %v216
        %v226 = vmul.f32 %v206, %v216
        %v227 = vmul.f32 %v207, %v216
        %v228 = vmul.f32 %v208, %v216
        %v229 = vmul.f32 %v209, %v216
        %v230 = vmul.f32 %v210, %v216
        %v231 = vmul.f32 %v211, %v216
        %v232 = vmul.f32 %v212, %v216
        %v233 = vmul.f32 %v213, %v216
        %v234 = vmax.f32 %v218, 0.0
        %v235 = vmax.f32 %v219, 0.0
        %v236 = vmax.f32 %v220, 0.0
        %v237 = vmax.f32 %v221, 0.0
        %v238 = vmax.f32 %v222, 0.0
        %v239 = vmax.f32 %v223, 0.0
        %v240 = vmax.f32 %v224, 0.0
        %v241 = vmax.f32 %v225, 0.0
        %v242 = vmax.f32 %v226, 0.0
        %v243 = vmax.f32 %v227, 0.0
        %v244 = vmax.f32 %v228, 0.0
        %v245 = vmax.f32 %v229, 0.0
        %v246 = vmax.f32 %v230, 0.0
        %v247 = vmax.f32 %v231, 0.0
        %v248 = vmax.f32 %v232, 0.0
        %v249 = vmax.f32 %v233, 0.0
        %250 = vst [vmem:[%s192] sm:$0xff] %v234
        %251 = vst [vmem:[%s192 + $0x8] sm:$0xff] %v235
        %252 = vst [vmem:[%s192 + $0x10] sm:$0xff] %v236
        %253 = vst [vmem:[%s192 + $0x18] sm:$0xff] %v237
        %254 = vst [vmem:[%s192 + $0x20] sm:$0xff] %v238
        %255 = vst [vmem:[%s192 + $0x28] sm:$0xff] %v239
        %256 = vst [vmem:[%s192 + $0x30] sm:$0xff] %v240
        %257 = vst [vmem:[%s192 + $0x38] sm:$0xff] %v241
        %258 = vst [vmem:[%s192 + $0x40] sm:$0xff] %v242
        %259 = vst [vmem:[%s192 + $0x48] sm:$0xff] %v243
        %260 = vst [vmem:[%s192 + $0x50] sm:$0xff] %v244
        %261 = vst [vmem:[%s192 + $0x58] sm:$0xff] %v245
        %262 = vst [vmem:[%s192 + $0x60] sm:$0xff] %v246
        %263 = vst [vmem:[%s192 + $0x68] sm:$0xff] %v247
        %264 = vst [vmem:[%s192 + $0x70] sm:$0xff] %v248
        %265 = vst [vmem:[%s192 + $0x78] sm:$0xff] %v249
        %s266 = sand.u32 %s95, 1
        %s267 = scalar_lea.sflag [#allocation4], %s266
        %s268 = sand.u32 %s95, 1
        %s269 = smul.addr %s268, 128
        %s270 = scalar_lea.vmem [#allocation5], %s269
        // Predicated region
        $region33: #{enc_module_forward.3} parent=27 // pred_check
          %p271 = pneg %p105
        $region34: #{enc_module_forward.3} parent=27 // pred_check_branch
          %273 = sbr.rel (%p271) target = $region36
        $region35: #{enc_module_forward.3} parent=27 // pred_region
          %s274 = smul.u32 16, %s24
          %276 = vsyncadd %s267, 0
          %s277 = smul.addr %s23, 32
          %s278 = sadd.s32 %s274, %s277
          %s279 = smul.addr %s278, 8
          %s280 = scalar_lea.hbm %s2, %s279
          %s281 = sshll.u32 %s270, 4
          %s282 = int_to_ptr.vmem [resolvable:$true] %s281
          %s283 = sshll.u32 %s280, 4
          %s284 = int_to_ptr.hbm [resolvable:$true] %s283
          %289 = dma.vmem_to_hbm [thread:$0]  %s282, 2048, %s284, %s267, 128, 128, 8
        $region36: #{enc_module_forward.3} parent=27 // pred_fallthru
          _
      $region28: #{enc_module_forward.3} parent=5 // pred_fallthru
        _
      %p290 = scmp.le.s32.totalorder 2, %s14
      // Predicated region
      $region37: #{enc_module_forward.3} parent=5 // pred_check
        %p291 = pneg %p290
      $region38: #{enc_module_forward.3} parent=5 // pred_check_branch
        %293 = sbr.rel (%p291) target = $region40
      $region39: #{enc_module_forward.3} parent=5 // pred_region
        %s294 = ssub.s32 %s14, 2
        // Predicated region
        $region41: #{enc_module_forward.3} parent=39 // pred_check
          %p295 = pneg %p111
        $region42: #{enc_module_forward.3} parent=39 // pred_check_branch
          %297 = sbr.rel (%p295) target = $region44
        $region43: #{enc_module_forward.3} parent=39 // pred_region
          %s298 = sand.u32 %s96, 1
          %s299 = scalar_lea.sflag [#allocation4], %s298
          %s300 = sand.u32 %s96, 1
          %s301 = smul.addr %s300, 128
          %s302 = scalar_lea.vmem [#allocation5], %s301
          %304 = dma.done %s299, 2048
        $region44: #{enc_module_forward.3} parent=39 // pred_fallthru
          _
      $region40: #{enc_module_forward.3} parent=5 // pred_fallthru
        _
    $region6: #{enc_module_forward.3} parent=1 // loop_footer
      %s18 = sadd.s32 1, %s14
    $region7: #{enc_module_forward.3} parent=1 // loop_footer_branch
      %13 = sbr.rel target = $region3
    $region8: #{enc_module_forward.3} parent=1 // loop_exit
      _
    %305 = vsyncpa [#allocation3], 1
    %s306 = scalar_lea.sflag [#allocation3], 1
    %307 = vsyncpa %s306, 1
    %308 = vsyncpa [#allocation4], 1
    %s309 = scalar_lea.sflag [#allocation4], 1
    %310 = vsyncpa %s309, 1

// kernel: enc_module_forward.2
$region0: #{enc_module_forward.2}
  #allocation0 [shape = 'u32[]', space=smem, size = 0x4, offset = 0x4, fixed_abs, tag = 'smem constant byte address 0x4 - core index']
  #allocation1 [shape = 'u32[72,128]{1,0:T(1,128)}', space=vmem, size = 0x9000, scoped, tag = 'internal scratch']
  %s0 = inlined_call_operand.hbm [shape: f32[2,256,128], index: 0, kind: input, shape index: {}]
  %s1 = inlined_call_operand.hbm [shape: bf16[128,128], index: 1, kind: input, shape index: {}]
  %s2 = inlined_call_operand.hbm [shape: f32[1,128], index: 2, kind: input, shape index: {}]
  %s3 = inlined_call_operand.hbm [shape: f32[1,128], index: 3, kind: input, shape index: {}]
  %s4 = inlined_call_operand.hbm [shape: f32[32,128], index: 4, kind: input, shape index: {}]
  %s5 = inlined_call_operand.vmem [shape: f32[1,32], index: 5, kind: input, shape index: {}]
  %s6 = inlined_call_operand.vmem [shape: f32[1,32], index: 6, kind: input, shape index: {}]
  %s7 = inlined_call_operand.hbm [shape: f32[32,1], index: 7, kind: input, shape index: {}]
  %s8 = inlined_call_operand.hbm [shape: f32[32,1], index: 8, kind: input, shape index: {}]
  %s9 = inlined_call_operand.hbm [shape: bf16[128,128], index: 9, kind: input, shape index: {}]
  %s10 = inlined_call_operand.vmem [shape: f32[1,128], index: 10, kind: input, shape index: {}]
  %s11 = inlined_call_operand.hbm [shape: bf16[128,128], index: 11, kind: input, shape index: {}]
  %s12 = inlined_call_operand.vmem [shape: f32[1,128], index: 12, kind: input, shape index: {}]
  %s13 = inlined_call_operand.vmem [shape: f32[2,1,128], index: 13, kind: output, shape index: {0}]
  %s14 = inlined_call_operand.hbm [shape: f32[2,1,128], index: 14, kind: output, shape index: {1}]
  %15 = xla_tuple %s13, %s14
  %s16 = sld [smem:[#allocation0]]
  $region129: #{enc_module_forward.2} parent=0
    _
  %s18 = ssub.s32 1, %s16
  %s19 = scalar_select 0, %s18, %s16
  $region1: #{enc_module_forward.2} parent=0
    #allocation2 [shape = 'u8[262144]{0}', space=vmem, size = 0x40000, scoped, tag = 'input window, operand 0']
    #allocation3 [shape = 's32[2]{0}', space=sflag, size = 0x8, scoped, tag = 'scoped memory for enc_module_forward.2']
    #allocation4 [shape = 's32[2]{0}', space=sflag, size = 0x8, scoped, tag = 'scoped memory for enc_module_forward.2']
    #allocation5 [shape = 'u8[32768]{0}', space=vmem, size = 0x8000, scoped, tag = 'input window, operand 1, single buffered']
    #allocation6 [shape = 's32[1]{0}', space=sflag, size = 0x4, scoped, tag = 'scoped memory for enc_module_forward.2']
    #allocation7 [shape = 'u8[512]{0}', space=vmem, size = 0x400, scoped, tag = 'input window, operand 2, single buffered']
    #allocation8 [shape = 'u8[512]{0}', space=vmem, size = 0x400, scoped, tag = 'input window, operand 3, single buffered']
    #allocation9 [shape = 's32[1]{0}', space=sflag, size = 0x4, scoped, tag = 'scoped memory for enc_module_forward.2']
    #allocation10 [shape = 'u8[16384]{0}', space=vmem, size = 0x4000, scoped, tag = 'input window, operand 4, single buffered']
    #allocation11 [shape = 'u8[16384]{0}', space=vmem, size = 0x4000, scoped, tag = 'input window, operand 7, single buffered']
    #allocation12 [shape = 's32[1]{0}', space=sflag, size = 0x4, scoped, tag = 'scoped memory for enc_module_forward.2']
    #allocation13 [shape = 'u8[16384]{0}', space=vmem, size = 0x4000, scoped, tag = 'input window, operand 8, single buffered']
    #allocation14 [shape = 'u8[32768]{0}', space=vmem, size = 0x8000, scoped, tag = 'input window, operand 9, single buffered']
    #allocation15 [shape = 's32[1]{0}', space=sflag, size = 0x4, scoped, tag = 'scoped memory for enc_module_forward.2']
    #allocation16 [shape = 'u8[32768]{0}', space=vmem, size = 0x8000, scoped, tag = 'input window, operand 11, single buffered']
    #allocation17 [shape = 'u8[1024]{0}', space=vmem, size = 0x400, scoped, tag = 'output window, operand 1']
    %20 = vsyncpa [#allocation3], 0
    %s21 = scalar_lea.sflag [#allocation3], 1
    %22 = vsyncpa %s21, 0
    %23 = vsyncpa [#allocation6], 0
    %24 = vsyncpa [#allocation9], 0
    %25 = vsyncpa [#allocation12], 0
    %26 = vsyncpa [#allocation15], 0
    %27 = vsyncpa [#allocation4], 0
    %s28 = scalar_lea.sflag [#allocation4], 1
    %29 = vsyncpa %s28, 0
    loop: start=0, step=1, limit=4
    $region2: #{enc_module_forward.2} parent=1 // loop_pre_header
      _
    $region3: #{enc_module_forward.2} parent=1 // loop_header
      %s31 = sphi 0, %s35
      %p32 = scmp.ge.s32.totalorder %s31, 4
      %s41 = sphi 0, %s43
      %s44 = sphi 0, %s41
      %s45 = sphi 0, %s44
      %s61 = sphi 0, %s45
      %s65 = sphi 0, %s65
      %s67 = sphi 0, %s65
      %s68 = sphi 0, %s67
      %s82 = sphi 0, %s68
      %s86 = sphi 0, %s86
      %s88 = sphi 0, %s86
      %s89 = sphi 0, %s88
      %s103 = sphi 0, %s89
      %s107 = sphi 0, %s107
      %s109 = sphi 0, %s107
      %s110 = sphi 0, %s109
      %s124 = sphi 0, %s110
      %s128 = sphi 0, %s128
      %s130 = sphi 0, %s128
      %s131 = sphi 0, %s130
      %s145 = sphi 0, %s131
      %s149 = sphi 0, %s149
      %s151 = sphi 0, %s149
      %s152 = sphi 0, %s151
      %s166 = sphi 0, %s152
      %s170 = sphi 0, %s170
      %s172 = sphi 0, %s170
      %s173 = sphi 0, %s172
      %s187 = sphi 0, %s173
      %s191 = sphi 0, %s191
      %s193 = sphi 0, %s191
      %s194 = sphi 0, %s193
      %s208 = sphi 0, %s194
      %s212 = sphi 0, %s212
      %s214 = sphi 0, %s212
      %s215 = sphi 0, %s214
      %s229 = sphi 0, %s215
      %s233 = sphi 0, %s233
      %s235 = sphi 0, %s233
      %s236 = sphi 0, %s235
      %s250 = sphi 0, %s236
      %s254 = sphi 0, %s254
      %s256 = sphi 0, %s254
      %s257 = sphi 0, %s256
      %s271 = sphi 0, %s257
      %s275 = sphi 0, %s275
      %s277 = sphi 0, %s275
      %s278 = sphi 0, %s277
      %s292 = sphi 0, %s278
      %s296 = sphi 0, %s296
      %s298 = sphi 0, %s296
      %s299 = sphi 0, %s298
      %s313 = sphi 0, %s299
      %s319 = sphi 0, %s321
      %s322 = sphi 0, %s319
      %s323 = sphi 0, %s322
      %s339 = sphi 0, %s323
      %s345 = sphi 0, %s347
      %s348 = sphi 0, %s345
      %s349 = sphi 0, %s348
      %s365 = sphi 0, %s349
    $region4: #{enc_module_forward.2} parent=1 // loop_header_branch
      %34 = sbr.rel (%p32) target = $region8
    $region5: #{enc_module_forward.2} parent=1 // loop_body
      %s36 = ssub.s32 %s31, 1
      %s37 = ssub.s32 %s31, 2
      %s38 = sadd.s32 %s31, 1
      %s39 = ssub.s32 %s31, %s38
      %p40 = scmp.eq.s32.totalorder %s39, 0
      %s42 = sadd.s32 %s41, 1
      %s43 = scalar_select %p40, %s41, %s42
      %p46 = pneg %p40
      %p47 = scmp.eq.s32.totalorder %s31, 1
      %p48 = por %p46, %p47
      %p49 = scmp.ne.s32.totalorder %s41, %s44
      %p50 = scmp.eq.s32.totalorder %s31, 0
      %p51 = por %p49, %p50
      %p52 = scmp.ne.s32.totalorder %s41, %s44
      %p53 = scmp.eq.s32.totalorder %s36, 1
      %p54 = por %p52, %p53
      %p55 = scmp.ne.s32.totalorder %s44, %s45
      %p56 = scmp.eq.s32.totalorder %s36, 0
      %p57 = por %p55, %p56
      %p58 = scmp.ne.s32.totalorder %s44, %s45
      %p59 = scmp.eq.s32.totalorder %s37, 1
      %p60 = por %p58, %p59
      %p62 = scmp.ne.s32.totalorder %s45, %s61
      %p63 = scmp.eq.s32.totalorder %s37, 0
      %p64 = por %p62, %p63
      %s66 = sadd.s32 %s65, 1
      %p69 = scmp.eq.s32.totalorder %s31, 1
      %p70 = scmp.ne.s32.totalorder %s65, %s67
      %p71 = scmp.eq.s32.totalorder %s31, 0
      %p72 = por %p70, %p71
      %p73 = scmp.ne.s32.totalorder %s65, %s67
      %p74 = scmp.eq.s32.totalorder %s36, 1
      %p75 = por %p73, %p74
      %p76 = scmp.ne.s32.totalorder %s67, %s68
      %p77 = scmp.eq.s32.totalorder %s36, 0
      %p78 = por %p76, %p77
      %p79 = scmp.ne.s32.totalorder %s67, %s68
      %p80 = scmp.eq.s32.totalorder %s37, 1
      %p81 = por %p79, %p80
      %p83 = scmp.ne.s32.totalorder %s68, %s82
      %p84 = scmp.eq.s32.totalorder %s37, 0
      %p85 = por %p83, %p84
      %s87 = sadd.s32 %s86, 1
      %p90 = scmp.eq.s32.totalorder %s31, 1
      %p91 = scmp.ne.s32.totalorder %s86, %s88
      %p92 = scmp.eq.s32.totalorder %s31, 0
      %p93 = por %p91, %p92
      %p94 = scmp.ne.s32.totalorder %s86, %s88
      %p95 = scmp.eq.s32.totalorder %s36, 1
      %p96 = por %p94, %p95
      %p97 = scmp.ne.s32.totalorder %s88, %s89
      %p98 = scmp.eq.s32.totalorder %s36, 0
      %p99 = por %p97, %p98
      %p100 = scmp.ne.s32.totalorder %s88, %s89
      %p101 = scmp.eq.s32.totalorder %s37, 1
      %p102 = por %p100, %p101
      %p104 = scmp.ne.s32.totalorder %s89, %s103
      %p105 = scmp.eq.s32.totalorder %s37, 0
      %p106 = por %p104, %p105
      %s108 = sadd.s32 %s107, 1
      %p111 = scmp.eq.s32.totalorder %s31, 1
      %p112 = scmp.ne.s32.totalorder %s107, %s109
      %p113 = scmp.eq.s32.totalorder %s31, 0
      %p114 = por %p112, %p113
      %p115 = scmp.ne.s32.totalorder %s107, %s109
      %p116 = scmp.eq.s32.totalorder %s36, 1
      %p117 = por %p115, %p116
      %p118 = scmp.ne.s32.totalorder %s109, %s110
      %p119 = scmp.eq.s32.totalorder %s36, 0
      %p120 = por %p118, %p119
      %p121 = scmp.ne.s32.totalorder %s109, %s110
      %p122 = scmp.eq.s32.totalorder %s37, 1
      %p123 = por %p121, %p122
      %p125 = scmp.ne.s32.totalorder %s110, %s124
      %p126 = scmp.eq.s32.totalorder %s37, 0
      %p127 = por %p125, %p126
      %s129 = sadd.s32 %s128, 1
      %p132 = scmp.eq.s32.totalorder %s31, 1
      %p133 = scmp.ne.s32.totalorder %s128, %s130
      %p134 = scmp.eq.s32.totalorder %s31, 0
      %p135 = por %p133, %p134
      %p136 = scmp.ne.s32.totalorder %s128, %s130
      %p137 = scmp.eq.s32.totalorder %s36, 1
      %p138 = por %p136, %p137
      %p139 = scmp.ne.s32.totalorder %s130, %s131
      %p140 = scmp.eq.s32.totalorder %s36, 0
      %p141 = por %p139, %p140
      %p142 = scmp.ne.s32.totalorder %s130, %s131
      %p143 = scmp.eq.s32.totalorder %s37, 1
      %p144 = por %p142, %p143
      %p146 = scmp.ne.s32.totalorder %s131, %s145
      %p147 = scmp.eq.s32.totalorder %s37, 0
      %p148 = por %p146, %p147
      %s150 = sadd.s32 %s149, 1
      %p153 = scmp.eq.s32.totalorder %s31, 1
      %p154 = scmp.ne.s32.totalorder %s149, %s151
      %p155 = scmp.eq.s32.totalorder %s31, 0
      %p156 = por %p154, %p155
      %p157 = scmp.ne.s32.totalorder %s149, %s151
      %p158 = scmp.eq.s32.totalorder %s36, 1
      %p159 = por %p157, %p158
      %p160 = scmp.ne.s32.totalorder %s151, %s152
      %p161 = scmp.eq.s32.totalorder %s36, 0
      %p162 = por %p160, %p161
      %p163 = scmp.ne.s32.totalorder %s151, %s152
      %p164 = scmp.eq.s32.totalorder %s37, 1
      %p165 = por %p163, %p164
      %p167 = scmp.ne.s32.totalorder %s152, %s166
      %p168 = scmp.eq.s32.totalorder %s37, 0
      %p169 = por %p167, %p168
      %s171 = sadd.s32 %s170, 1
      %p174 = scmp.eq.s32.totalorder %s31, 1
      %p175 = scmp.ne.s32.totalorder %s170, %s172
      %p176 = scmp.eq.s32.totalorder %s31, 0
      %p177 = por %p175, %p176
      %p178 = scmp.ne.s32.totalorder %s170, %s172
      %p179 = scmp.eq.s32.totalorder %s36, 1
      %p180 = por %p178, %p179
      %p181 = scmp.ne.s32.totalorder %s172, %s173
      %p182 = scmp.eq.s32.totalorder %s36, 0
      %p183 = por %p181, %p182
      %p184 = scmp.ne.s32.totalorder %s172, %s173
      %p185 = scmp.eq.s32.totalorder %s37, 1
      %p186 = por %p184, %p185
      %p188 = scmp.ne.s32.totalorder %s173, %s187
      %p189 = scmp.eq.s32.totalorder %s37, 0
      %p190 = por %p188, %p189
      %s192 = sadd.s32 %s191, 1
      %p195 = scmp.eq.s32.totalorder %s31, 1
      %p196 = scmp.ne.s32.totalorder %s191, %s193
      %p197 = scmp.eq.s32.totalorder %s31, 0
      %p198 = por %p196, %p197
      %p199 = scmp.ne.s32.totalorder %s191, %s193
      %p200 = scmp.eq.s32.totalorder %s36, 1
      %p201 = por %p199, %p200
      %p202 = scmp.ne.s32.totalorder %s193, %s194
      %p203 = scmp.eq.s32.totalorder %s36, 0
      %p204 = por %p202, %p203
      %p205 = scmp.ne.s32.totalorder %s193, %s194
      %p206 = scmp.eq.s32.totalorder %s37, 1
      %p207 = por %p205, %p206
      %p209 = scmp.ne.s32.totalorder %s194, %s208
      %p210 = scmp.eq.s32.totalorder %s37, 0
      %p211 = por %p209, %p210
      %s213 = sadd.s32 %s212, 1
      %p216 = scmp.eq.s32.totalorder %s31, 1
      %p217 = scmp.ne.s32.totalorder %s212, %s214
      %p218 = scmp.eq.s32.totalorder %s31, 0
      %p219 = por %p217, %p218
      %p220 = scmp.ne.s32.totalorder %s212, %s214
      %p221 = scmp.eq.s32.totalorder %s36, 1
      %p222 = por %p220, %p221
      %p223 = scmp.ne.s32.totalorder %s214, %s215
      %p224 = scmp.eq.s32.totalorder %s36, 0
      %p225 = por %p223, %p224
      %p226 = scmp.ne.s32.totalorder %s214, %s215
      %p227 = scmp.eq.s32.totalorder %s37, 1
      %p228 = por %p226, %p227
      %p230 = scmp.ne.s32.totalorder %s215, %s229
      %p231 = scmp.eq.s32.totalorder %s37, 0
      %p232 = por %p230, %p231
      %s234 = sadd.s32 %s233, 1
      %p237 = scmp.eq.s32.totalorder %s31, 1
      %p238 = scmp.ne.s32.totalorder %s233, %s235
      %p239 = scmp.eq.s32.totalorder %s31, 0
      %p240 = por %p238, %p239
      %p241 = scmp.ne.s32.totalorder %s233, %s235
      %p242 = scmp.eq.s32.totalorder %s36, 1
      %p243 = por %p241, %p242
      %p244 = scmp.ne.s32.totalorder %s235, %s236
      %p245 = scmp.eq.s32.totalorder %s36, 0
      %p246 = por %p244, %p245
      %p247 = scmp.ne.s32.totalorder %s235, %s236
      %p248 = scmp.eq.s32.totalorder %s37, 1
      %p249 = por %p247, %p248
      %p251 = scmp.ne.s32.totalorder %s236, %s250
      %p252 = scmp.eq.s32.totalorder %s37, 0
      %p253 = por %p251, %p252
      %s255 = sadd.s32 %s254, 1
      %p258 = scmp.eq.s32.totalorder %s31, 1
      %p259 = scmp.ne.s32.totalorder %s254, %s256
      %p260 = scmp.eq.s32.totalorder %s31, 0
      %p261 = por %p259, %p260
      %p262 = scmp.ne.s32.totalorder %s254, %s256
      %p263 = scmp.eq.s32.totalorder %s36, 1
      %p264 = por %p262, %p263
      %p265 = scmp.ne.s32.totalorder %s256, %s257
      %p266 = scmp.eq.s32.totalorder %s36, 0
      %p267 = por %p265, %p266
      %p268 = scmp.ne.s32.totalorder %s256, %s257
      %p269 = scmp.eq.s32.totalorder %s37, 1
      %p270 = por %p268, %p269
      %p272 = scmp.ne.s32.totalorder %s257, %s271
      %p273 = scmp.eq.s32.totalorder %s37, 0
      %p274 = por %p272, %p273
      %s276 = sadd.s32 %s275, 1
      %p279 = scmp.eq.s32.totalorder %s31, 1
      %p280 = scmp.ne.s32.totalorder %s275, %s277
      %p281 = scmp.eq.s32.totalorder %s31, 0
      %p282 = por %p280, %p281
      %p283 = scmp.ne.s32.totalorder %s275, %s277
      %p284 = scmp.eq.s32.totalorder %s36, 1
      %p285 = por %p283, %p284
      %p286 = scmp.ne.s32.totalorder %s277, %s278
      %p287 = scmp.eq.s32.totalorder %s36, 0
      %p288 = por %p286, %p287
      %p289 = scmp.ne.s32.totalorder %s277, %s278
      %p290 = scmp.eq.s32.totalorder %s37, 1
      %p291 = por %p289, %p290
      %p293 = scmp.ne.s32.totalorder %s278, %s292
      %p294 = scmp.eq.s32.totalorder %s37, 0
      %p295 = por %p293, %p294
      %s297 = sadd.s32 %s296, 1
      %p300 = scmp.eq.s32.totalorder %s31, 1
      %p301 = scmp.ne.s32.totalorder %s296, %s298
      %p302 = scmp.eq.s32.totalorder %s31, 0
      %p303 = por %p301, %p302
      %p304 = scmp.ne.s32.totalorder %s296, %s298
      %p305 = scmp.eq.s32.totalorder %s36, 1
      %p306 = por %p304, %p305
      %p307 = scmp.ne.s32.totalorder %s298, %s299
      %p308 = scmp.eq.s32.totalorder %s36, 0
      %p309 = por %p307, %p308
      %p310 = scmp.ne.s32.totalorder %s298, %s299
      %p311 = scmp.eq.s32.totalorder %s37, 1
      %p312 = por %p310, %p311
      %p314 = scmp.ne.s32.totalorder %s299, %s313
      %p315 = scmp.eq.s32.totalorder %s37, 0
      %p316 = por %p314, %p315
      %s317 = ssub.s32 %s31, %s38
      %p318 = scmp.eq.s32.totalorder %s317, 0
      %s320 = sadd.s32 %s319, 1
      %s321 = scalar_select %p318, %s319, %s320
      %p324 = pneg %p318
      %p325 = scmp.eq.s32.totalorder %s31, 1
      %p326 = por %p324, %p325
      %p327 = scmp.ne.s32.totalorder %s319, %s322
      %p328 = scmp.eq.s32.totalorder %s31, 0
      %p329 = por %p327, %p328
      %p330 = scmp.ne.s32.totalorder %s319, %s322
      %p331 = scmp.eq.s32.totalorder %s36, 1
      %p332 = por %p330, %p331
      %p333 = scmp.ne.s32.totalorder %s322, %s323
      %p334 = scmp.eq.s32.totalorder %s36, 0
      %p335 = por %p333, %p334
      %p336 = scmp.ne.s32.totalorder %s322, %s323
      %p337 = scmp.eq.s32.totalorder %s37, 1
      %p338 = por %p336, %p337
      %p340 = scmp.ne.s32.totalorder %s323, %s339
      %p341 = scmp.eq.s32.totalorder %s37, 0
      %p342 = por %p340, %p341
      %s343 = ssub.s32 %s31, %s38
      %p344 = scmp.eq.s32.totalorder %s343, 0
      %s346 = sadd.s32 %s345, 1
      %s347 = scalar_select %p344, %s345, %s346
      %p350 = pneg %p344
      %p351 = scmp.eq.s32.totalorder %s31, 1
      %p352 = por %p350, %p351
      %p353 = scmp.ne.s32.totalorder %s345, %s348
      %p354 = scmp.eq.s32.totalorder %s31, 0
      %p355 = por %p353, %p354
      %p356 = scmp.ne.s32.totalorder %s345, %s348
      %p357 = scmp.eq.s32.totalorder %s36, 1
      %p358 = por %p356, %p357
      %p359 = scmp.ne.s32.totalorder %s348, %s349
      %p360 = scmp.eq.s32.totalorder %s36, 0
      %p361 = por %p359, %p360
      %p362 = scmp.ne.s32.totalorder %s348, %s349
      %p363 = scmp.eq.s32.totalorder %s37, 1
      %p364 = por %p362, %p363
      %p366 = scmp.ne.s32.totalorder %s349, %s365
      %p367 = scmp.eq.s32.totalorder %s37, 0
      %p368 = por %p366, %p367
      %p369 = scmp.le.s32.totalorder 1, %s31
      %p370 = scmp.lt.s32.totalorder %s31, 3
      %p371 = pnand %p369, %p370
      %p372 = pneg %p371
      // Predicated region
      $region9: #{enc_module_forward.2} parent=5 // pred_check
        _
      $region10: #{enc_module_forward.2} parent=5 // pred_check_branch
        %374 = sbr.rel (%p371) target = $region12
      $region11: #{enc_module_forward.2} parent=5 // pred_region
        %s375 = ssub.s32 %s31, 1
        // Predicated region
        $region13: #{enc_module_forward.2} parent=11 // pred_check
          %p376 = pneg %p78
        $region14: #{enc_module_forward.2} parent=11 // pred_check_branch
          %378 = sbr.rel (%p376) target = $region16
        $region15: #{enc_module_forward.2} parent=11 // pred_region
          %380 = vsyncadd [#allocation6], 0
          %s381 = sshll.u32 %s1, 4
          %s382 = int_to_ptr.hbm [resolvable:$true] %s381
          %s383 = sshll.u32 [#allocation5], 4
          %s384 = int_to_ptr.vmem [resolvable:$true] %s383
          %389 = dma.hbm_to_vmem [thread:$0]  %s382, 1024, %s384, [#allocation6], 64, 64, 4
        $region16: #{enc_module_forward.2} parent=11 // pred_fallthru
          _
        // Predicated region
        $region17: #{enc_module_forward.2} parent=11 // pred_check
          %p390 = pneg %p99
        $region18: #{enc_module_forward.2} parent=11 // pred_check_branch
          %392 = sbr.rel (%p390) target = $region20
        $region19: #{enc_module_forward.2} parent=11 // pred_region
          %394 = vsyncadd [#allocation6], 0
          %s396 = sshll.u32 %s2, 4
          %s397 = int_to_ptr.hbm [resolvable:$true] %s396
          %s398 = sshll.u32 [#allocation7], 4
          %s399 = int_to_ptr.vmem [resolvable:$true] %s398
          %401 = dma.hbm_to_vmem [thread:$0]  %s397, 16, %s399, [#allocation6]
        $region20: #{enc_module_forward.2} parent=11 // pred_fallthru
          _
        // Predicated region
        $region21: #{enc_module_forward.2} parent=11 // pred_check
          %p402 = pneg %p120
        $region22: #{enc_module_forward.2} parent=11 // pred_check_branch
          %404 = sbr.rel (%p402) target = $region24
        $region23: #{enc_module_forward.2} parent=11 // pred_region
          %406 = vsyncadd [#allocation9], 0
          %s408 = sshll.u32 %s3, 4
          %s409 = int_to_ptr.hbm [resolvable:$true] %s408
          %s410 = sshll.u32 [#allocation8], 4
          %s411 = int_to_ptr.vmem [resolvable:$true] %s410
          %413 = dma.hbm_to_vmem [thread:$0]  %s409, 16, %s411, [#allocation9]
        $region24: #{enc_module_forward.2} parent=11 // pred_fallthru
          _
        // Predicated region
        $region25: #{enc_module_forward.2} parent=11 // pred_check
          %p414 = pneg %p141
        $region26: #{enc_module_forward.2} parent=11 // pred_check_branch
          %416 = sbr.rel (%p414) target = $region28
        $region27: #{enc_module_forward.2} parent=11 // pred_region
          %418 = vsyncadd [#allocation9], 0
          %s419 = sshll.u32 %s4, 4
          %s420 = int_to_ptr.hbm [resolvable:$true] %s419
          %s421 = sshll.u32 [#allocation10], 4
          %s422 = int_to_ptr.vmem [resolvable:$true] %s421
          %427 = dma.hbm_to_vmem [thread:$0]  %s420, 512, %s422, [#allocation9], 128, 128, 8
        $region28: #{enc_module_forward.2} parent=11 // pred_fallthru
          _
        // Predicated region
        $region29: #{enc_module_forward.2} parent=11 // pred_check
          %p428 = pneg %p162
        $region30: #{enc_module_forward.2} parent=11 // pred_check_branch
          %430 = sbr.rel (%p428) target = $region32
        $region31: #{enc_module_forward.2} parent=11 // pred_region
          _
        $region32: #{enc_module_forward.2} parent=11 // pred_fallthru
          _
        // Predicated region
        $region33: #{enc_module_forward.2} parent=11 // pred_check
          %p431 = pneg %p183
        $region34: #{enc_module_forward.2} parent=11 // pred_check_branch
          %433 = sbr.rel (%p431) target = $region36
        $region35: #{enc_module_forward.2} parent=11 // pred_region
          _
        $region36: #{enc_module_forward.2} parent=11 // pred_fallthru
          _
        // Predicated region
        $region37: #{enc_module_forward.2} parent=11 // pred_check
          %p434 = pneg %p204
        $region38: #{enc_module_forward.2} parent=11 // pred_check_branch
          %436 = sbr.rel (%p434) target = $region40
        $region39: #{enc_module_forward.2} parent=11 // pred_region
          %438 = vsyncadd [#allocation12], 0
          %s439 = sshll.u32 %s7, 4
          %s440 = int_to_ptr.hbm [resolvable:$true] %s439
          %s441 = sshll.u32 [#allocation11], 4
          %s442 = int_to_ptr.vmem [resolvable:$true] %s441
          %447 = dma.hbm_to_vmem [thread:$0]  %s440, 512, %s442, [#allocation12], 128, 128, 8
        $region40: #{enc_module_forward.2} parent=11 // pred_fallthru
          _
        // Predicated region
        $region41: #{enc_module_forward.2} parent=11 // pred_check
          %p448 = pneg %p225
        $region42: #{enc_module_forward.2} parent=11 // pred_check_branch
          %450 = sbr.rel (%p448) target = $region44
        $region43: #{enc_module_forward.2} parent=11 // pred_region
          %452 = vsyncadd [#allocation12], 0
          %s453 = sshll.u32 %s8, 4
          %s454 = int_to_ptr.hbm [resolvable:$true] %s453
          %s455 = sshll.u32 [#allocation13], 4
          %s456 = int_to_ptr.vmem [resolvable:$true] %s455
          %461 = dma.hbm_to_vmem [thread:$0]  %s454, 512, %s456, [#allocation12], 128, 128, 8
        $region44: #{enc_module_forward.2} parent=11 // pred_fallthru
          _
        // Predicated region
        $region45: #{enc_module_forward.2} parent=11 // pred_check
          %p462 = pneg %p246
        $region46: #{enc_module_forward.2} parent=11 // pred_check_branch
          %464 = sbr.rel (%p462) target = $region48
        $region47: #{enc_module_forward.2} parent=11 // pred_region
          %466 = vsyncadd [#allocation15], 0
          %s467 = sshll.u32 %s9, 4
          %s468 = int_to_ptr.hbm [resolvable:$true] %s467
          %s469 = sshll.u32 [#allocation14], 4
          %s470 = int_to_ptr.vmem [resolvable:$true] %s469
          %475 = dma.hbm_to_vmem [thread:$0]  %s468, 1024, %s470, [#allocation15], 64, 64, 4
        $region48: #{enc_module_forward.2} parent=11 // pred_fallthru
          _
        // Predicated region
        $region49: #{enc_module_forward.2} parent=11 // pred_check
          %p476 = pneg %p267
        $region50: #{enc_module_forward.2} parent=11 // pred_check_branch
          %478 = sbr.rel (%p476) target = $region52
        $region51: #{enc_module_forward.2} parent=11 // pred_region
          _
        $region52: #{enc_module_forward.2} parent=11 // pred_fallthru
          _
        // Predicated region
        $region53: #{enc_module_forward.2} parent=11 // pred_check
          %p479 = pneg %p288
        $region54: #{enc_module_forward.2} parent=11 // pred_check_branch
          %481 = sbr.rel (%p479) target = $region56
        $region55: #{enc_module_forward.2} parent=11 // pred_region
          %483 = vsyncadd [#allocation15], 0
          %s484 = sshll.u32 %s11, 4
          %s485 = int_to_ptr.hbm [resolvable:$true] %s484
          %s486 = sshll.u32 [#allocation16], 4
          %s487 = int_to_ptr.vmem [resolvable:$true] %s486
          %492 = dma.hbm_to_vmem [thread:$0]  %s485, 1024, %s487, [#allocation15], 64, 64, 4
        $region56: #{enc_module_forward.2} parent=11 // pred_fallthru
          _
        // Predicated region
        $region57: #{enc_module_forward.2} parent=11 // pred_check
          %p493 = pneg %p309
        $region58: #{enc_module_forward.2} parent=11 // pred_check_branch
          %495 = sbr.rel (%p493) target = $region60
        $region59: #{enc_module_forward.2} parent=11 // pred_region
          _
        $region60: #{enc_module_forward.2} parent=11 // pred_fallthru
          _
      $region12: #{enc_module_forward.2} parent=5 // pred_fallthru
        _
      %p496 = scmp.lt.s32.totalorder %s31, 2
      // Predicated region
      $region61: #{enc_module_forward.2} parent=5 // pred_check
        %p497 = pneg %p496
      $region62: #{enc_module_forward.2} parent=5 // pred_check_branch
        %499 = sbr.rel (%p497) target = $region64
      $region63: #{enc_module_forward.2} parent=5 // pred_region
        // Predicated region
        $region65: #{enc_module_forward.2} parent=63 // pred_check
          %p500 = pneg %p51
        $region66: #{enc_module_forward.2} parent=63 // pred_check_branch
          %502 = sbr.rel (%p500) target = $region68
        $region67: #{enc_module_forward.2} parent=63 // pred_region
          %s503 = sand.u32 %s41, 1
          %s504 = scalar_lea.sflag [#allocation3], %s503
          %s505 = sand.u32 %s41, 1
          %s506 = smul.addr %s505, 256
          %s507 = scalar_lea.vmem [#allocation2], %s506
          %509 = vsyncadd %s504, 0
          %s510 = smul.addr %s31, 32
          %s511 = smul.addr %s510, 8
          %s512 = scalar_lea.hbm %s0, %s511
          %s513 = sshll.u32 %s512, 4
          %s514 = int_to_ptr.hbm [resolvable:$true] %s513
          %s515 = sshll.u32 %s507, 4
          %s516 = int_to_ptr.vmem [resolvable:$true] %s515
          %521 = dma.hbm_to_vmem [thread:$0]  %s514, 4096, %s516, %s504, 128, 128, 8
        $region68: #{enc_module_forward.2} parent=63 // pred_fallthru
          _
      $region64: #{enc_module_forward.2} parent=5 // pred_fallthru
        _
      %p522 = scmp.le.s32.totalorder 1, %s31
      %p523 = scmp.lt.s32.totalorder %s31, 3
      %p524 = pnand %p522, %p523
      %p525 = pneg %p524
      // Predicated region
      $region69: #{enc_module_forward.2} parent=5 // pred_check
        _
      $region70: #{enc_module_forward.2} parent=5 // pred_check_branch
        %527 = sbr.rel (%p524) target = $region72
      $region71: #{enc_module_forward.2} parent=5 // pred_region
        %s528 = ssub.s32 %s31, 1
        %s529 = sand.u32 %s44, 1
        %s530 = scalar_lea.sflag [#allocation3], %s529
        %s531 = sand.u32 %s44, 1
        %s532 = smul.addr %s531, 256
        %s533 = scalar_lea.vmem [#allocation2], %s532
        // Predicated region
        $region73: #{enc_module_forward.2} parent=71 // pred_check
          %p534 = pneg %p57
        $region74: #{enc_module_forward.2} parent=71 // pred_check_branch
          %536 = sbr.rel (%p534) target = $region76
        $region75: #{enc_module_forward.2} parent=71 // pred_region
          %538 = dma.done %s530, 4096
        $region76: #{enc_module_forward.2} parent=71 // pred_fallthru
          _
        // Predicated region
        $region77: #{enc_module_forward.2} parent=71 // pred_check
          %p539 = pneg %p78
        $region78: #{enc_module_forward.2} parent=71 // pred_check_branch
          %541 = sbr.rel (%p539) target = $region80
        $region79: #{enc_module_forward.2} parent=71 // pred_region
          %543 = dma.done [#allocation6], 1024
        $region80: #{enc_module_forward.2} parent=71 // pred_fallthru
          _
        // Predicated region
        $region81: #{enc_module_forward.2} parent=71 // pred_check
          %p544 = pneg %p99
        $region82: #{enc_module_forward.2} parent=71 // pred_check_branch
          %546 = sbr.rel (%p544) target = $region84
        $region83: #{enc_module_forward.2} parent=71 // pred_region
          %548 = dma.done [#allocation6], 16
        $region84: #{enc_module_forward.2} parent=71 // pred_fallthru
          _
        // Predicated region
        $region85: #{enc_module_forward.2} parent=71 // pred_check
          %p549 = pneg %p120
        $region86: #{enc_module_forward.2} parent=71 // pred_check_branch
          %551 = sbr.rel (%p549) target = $region88
        $region87: #{enc_module_forward.2} parent=71 // pred_region
          %553 = dma.done [#allocation9], 16
        $region88: #{enc_module_forward.2} parent=71 // pred_fallthru
          _
        // Predicated region
        $region89: #{enc_module_forward.2} parent=71 // pred_check
          %p554 = pneg %p141
        $region90: #{enc_module_forward.2} parent=71 // pred_check_branch
          %556 = sbr.rel (%p554) target = $region92
        $region91: #{enc_module_forward.2} parent=71 // pred_region
          %558 = dma.done [#allocation9], 512
        $region92: #{enc_module_forward.2} parent=71 // pred_fallthru
          _
        // Predicated region
        $region93: #{enc_module_forward.2} parent=71 // pred_check
          %p559 = pneg %p204
        $region94: #{enc_module_forward.2} parent=71 // pred_check_branch
          %561 = sbr.rel (%p559) target = $region96
        $region95: #{enc_module_forward.2} parent=71 // pred_region
          %563 = dma.done [#allocation12], 512
        $region96: #{enc_module_forward.2} parent=71 // pred_fallthru
          _
        // Predicated region
        $region97: #{enc_module_forward.2} parent=71 // pred_check
          %p564 = pneg %p225
        $region98: #{enc_module_forward.2} parent=71 // pred_check_branch
          %566 = sbr.rel (%p564) target = $region100
        $region99: #{enc_module_forward.2} parent=71 // pred_region
          %568 = dma.done [#allocation12], 512
        $region100: #{enc_module_forward.2} parent=71 // pred_fallthru
          _
        // Predicated region
        $region101: #{enc_module_forward.2} parent=71 // pred_check
          %p569 = pneg %p246
        $region102: #{enc_module_forward.2} parent=71 // pred_check_branch
          %571 = sbr.rel (%p569) target = $region104
        $region103: #{enc_module_forward.2} parent=71 // pred_region
          %573 = dma.done [#allocation15], 1024
        $region104: #{enc_module_forward.2} parent=71 // pred_fallthru
          _
        // Predicated region
        $region105: #{enc_module_forward.2} parent=71 // pred_check
          %p574 = pneg %p288
        $region106: #{enc_module_forward.2} parent=71 // pred_check_branch
          %576 = sbr.rel (%p574) target = $region108
        $region107: #{enc_module_forward.2} parent=71 // pred_region
          %578 = dma.done [#allocation15], 1024
        $region108: #{enc_module_forward.2} parent=71 // pred_fallthru
          _
        %s579 = sand.u32 %s44, 1
        %s580 = scalar_lea.sflag [#allocation3], %s579
        %s581 = sand.u32 %s44, 1
        %s582 = smul.addr %s581, 256
        %s583 = scalar_lea.vmem [#allocation2], %s582
        %p584 = pneg %p57
        %p585 = pneg %p54
        %p586 = pneg %p78
        %p587 = pneg %p75
        %p588 = pneg %p99
        %p589 = pneg %p96
        %p590 = pneg %p120
        %p591 = pneg %p117
        %p592 = pneg %p141
        %p593 = pneg %p138
        %p594 = pneg %p162
        %p595 = pneg %p159
        %p596 = pneg %p183
        %p597 = pneg %p180
        %p598 = pneg %p204
        %p599 = pneg %p201
        %p600 = pneg %p225
        %p601 = pneg %p222
        %p602 = pneg %p246
        %p603 = pneg %p243
        %p604 = pneg %p267
        %p605 = pneg %p264
        %p606 = pneg %p288
        %p607 = pneg %p285
        %p608 = pneg %p309
        %p609 = pneg %p306
        %p610 = pneg %p335
        %p611 = pneg %p332
        %p612 = scmp.lt.s32.totalorder %s36, 1
        %s613 = scalar_select %p612, %s36, 1
        %s614 = scalar_lea.vmem %s13, %s613
        %p615 = pneg %p361
        %p616 = pneg %p358
        %s617 = sand.u32 %s348, 1
        %s618 = scalar_lea.sflag [#allocation4], %s617
        %s619 = sand.u32 %s348, 1
        %s620 = scalar_lea.vmem [#allocation17], %s619
        %p621 = scmp.lt.s32.totalorder %s36, 1
        %s622 = scalar_select %p621, %s36, 1
        %s623 = scalar_lea.vmem %s13, %s622
        %v625 = vld [vmem:[%s533] sm:$0xff]
        %v626 = vld [vmem:[%s533 + $0x8] sm:$0xff]
        %v627 = vld [vmem:[%s533 + $0x10] sm:$0xff]
        %v628 = vld [vmem:[%s533 + $0x18] sm:$0xff]
        %v629 = vld [vmem:[%s533 + $0x20] sm:$0xff]
        %v630 = vld [vmem:[%s533 + $0x28] sm:$0xff]
        %v631 = vld [vmem:[%s533 + $0x30] sm:$0xff]
        %v632 = vld [vmem:[%s533 + $0x38] sm:$0xff]
        %v633 = vld [vmem:[%s533 + $0x40] sm:$0xff]
        %v634 = vld [vmem:[%s533 + $0x48] sm:$0xff]
        %v635 = vld [vmem:[%s533 + $0x50] sm:$0xff]
        %v636 = vld [vmem:[%s533 + $0x58] sm:$0xff]
        %v637 = vld [vmem:[%s533 + $0x60] sm:$0xff]
        %v638 = vld [vmem:[%s533 + $0x68] sm:$0xff]
        %v639 = vld [vmem:[%s533 + $0x70] sm:$0xff]
        %v640 = vld [vmem:[%s533 + $0x78] sm:$0xff]
        %v641 = vld [vmem:[%s533 + $0x80] sm:$0xff]
        %v642 = vld [vmem:[%s533 + $0x88] sm:$0xff]
        %v643 = vld [vmem:[%s533 + $0x90] sm:$0xff]
        %v644 = vld [vmem:[%s533 + $0x98] sm:$0xff]
        %v645 = vld [vmem:[%s533 + $0xa0] sm:$0xff]
        %v646 = vld [vmem:[%s533 + $0xa8] sm:$0xff]
        %v647 = vld [vmem:[%s533 + $0xb0] sm:$0xff]
        %v648 = vld [vmem:[%s533 + $0xb8] sm:$0xff]
        %v649 = vld [vmem:[%s533 + $0xc0] sm:$0xff]
        %v650 = vld [vmem:[%s533 + $0xc8] sm:$0xff]
        %v651 = vld [vmem:[%s533 + $0xd0] sm:$0xff]
        %v652 = vld [vmem:[%s533 + $0xd8] sm:$0xff]
        %v653 = vld [vmem:[%s533 + $0xe0] sm:$0xff]
        %v654 = vld [vmem:[%s533 + $0xe8] sm:$0xff]
        %v655 = vld [vmem:[%s533 + $0xf0] sm:$0xff]
        %v656 = vld [vmem:[%s533 + $0xf8] sm:$0xff]
        %v657 = vpack.c.bf16 %v626, %v625
        %v658 = vpack.c.bf16 %v628, %v627
        %v659 = vpack.c.bf16 %v630, %v629
        %v660 = vpack.c.bf16 %v632, %v631
        %v661 = vpack.c.bf16 %v634, %v633
        %v662 = vpack.c.bf16 %v636, %v635
        %v663 = vpack.c.bf16 %v638, %v637
        %v664 = vpack.c.bf16 %v640, %v639
        %v665 = vpack.c.bf16 %v642, %v641
        %v666 = vpack.c.bf16 %v644, %v643
        %v667 = vpack.c.bf16 %v646, %v645
        %v668 = vpack.c.bf16 %v648, %v647
        %v669 = vpack.c.bf16 %v650, %v649
        %v670 = vpack.c.bf16 %v652, %v651
        %v671 = vpack.c.bf16 %v654, %v653
        %v672 = vpack.c.bf16 %v656, %v655
        %v673 = vld [vmem:[#allocation5] sm:$0xf]
        %v674 = vld [vmem:[#allocation5 + $0x4] sm:$0xf]
        %v675 = vld [vmem:[#allocation5 + $0x8] sm:$0xf]
        %v676 = vld [vmem:[#allocation5 + $0xc] sm:$0xf]
        %v677 = vld [vmem:[#allocation5 + $0x10] sm:$0xf]
        %v678 = vld [vmem:[#allocation5 + $0x14] sm:$0xf]
        %v679 = vld [vmem:[#allocation5 + $0x18] sm:$0xf]
        %v680 = vld [vmem:[#allocation5 + $0x1c] sm:$0xf]
        %v681 = vld [vmem:[#allocation5 + $0x20] sm:$0xf]
        %v682 = vld [vmem:[#allocation5 + $0x24] sm:$0xf]
        %v683 = vld [vmem:[#allocation5 + $0x28] sm:$0xf]
        %v684 = vld [vmem:[#allocation5 + $0x2c] sm:$0xf]
        %v685 = vld [vmem:[#allocation5 + $0x30] sm:$0xf]
        %v686 = vld [vmem:[#allocation5 + $0x34] sm:$0xf]
        %v687 = vld [vmem:[#allocation5 + $0x38] sm:$0xf]
        %v688 = vld [vmem:[#allocation5 + $0x3c] sm:$0xf]
        %v705 = vunpack.c.l.b16 %v673
        %v706 = vunpack.c.l.b16 %v674
        %v707 = vunpack.c.l.b16 %v675
        %v708 = vunpack.c.l.b16 %v676
        %v709 = vunpack.c.l.b16 %v677
        %v710 = vunpack.c.l.b16 %v678
        %v711 = vunpack.c.l.b16 %v679
        %v712 = vunpack.c.l.b16 %v680
        %v713 = vunpack.c.l.b16 %v681
        %v714 = vunpack.c.l.b16 %v682
        %v715 = vunpack.c.l.b16 %v683
        %v716 = vunpack.c.l.b16 %v684
        %v717 = vunpack.c.l.b16 %v685
        %v718 = vunpack.c.l.b16 %v686
        %v719 = vunpack.c.l.b16 %v687
        %v720 = vunpack.c.l.b16 %v688
        %v721 = vpack.c.b16 %v706, %v705
        %v722 = vpack.c.b16 %v708, %v707
        %v723 = vpack.c.b16 %v710, %v709
        %v724 = vpack.c.b16 %v712, %v711
        %v725 = vpack.c.b16 %v714, %v713
        %v726 = vpack.c.b16 %v716, %v715
        %v727 = vpack.c.b16 %v718, %v717
        %v728 = vpack.c.b16 %v720, %v719
        %737 = vmatpush.bf16.msra.mxu0 %v728
        %738 = vmatpush.bf16.msra.mxu0 %v727
        %739 = vmatpush.bf16.msra.mxu0 %v726
        %740 = vmatpush.bf16.msra.mxu0 %v725
        %741 = vmatpush.bf16.msra.mxu0 %v724
        %742 = vmatpush.bf16.msra.mxu0 %v723
        %743 = vmatpush.bf16.msra.mxu0 %v722
        %744 = vmatpush.bf16.msra.mxu0 %v721
        %745 = vmatmul.bf16.gmra.mxu0 %v657
        %v746 = vpop.f32.mrf.mxu0
        %v747 = vadd.f32 0.0, %v746
        %v748 = vpop.f32.mrf.mxu0
        %v749 = vadd.f32 0.0, %v748
        %750 = vmatmul.bf16.gmra.mxu0 %v658
        %v751 = vpop.f32.mrf.mxu0
        %v752 = vadd.f32 0.0, %v751
        %v753 = vpop.f32.mrf.mxu0
        %v754 = vadd.f32 0.0, %v753
        %755 = vmatmul.bf16.gmra.mxu0 %v659
        %v756 = vpop.f32.mrf.mxu0
        %v757 = vadd.f32 0.0, %v756
        %v758 = vpop.f32.mrf.mxu0
        %v759 = vadd.f32 0.0, %v758
        %760 = vmatmul.bf16.gmra.mxu0 %v660
        %v761 = vpop.f32.mrf.mxu0
        %v762 = vadd.f32 0.0, %v761
        %v763 = vpop.f32.mrf.mxu0
        %v764 = vadd.f32 0.0, %v763
        %765 = vmatmul.bf16.gmra.mxu0 %v661
        %v766 = vpop.f32.mrf.mxu0
        %v767 = vadd.f32 0.0, %v766
        %v768 = vpop.f32.mrf.mxu0
        %v769 = vadd.f32 0.0, %v768
        %770 = vmatmul.bf16.gmra.mxu0 %v662
        %v771 = vpop.f32.mrf.mxu0
        %v772 = vadd.f32 0.0, %v771
        %v773 = vpop.f32.mrf.mxu0
        %v774 = vadd.f32 0.0, %v773
        %775 = vmatmul.bf16.gmra.mxu0 %v663
        %v776 = vpop.f32.mrf.mxu0
        %v777 = vadd.f32 0.0, %v776
        %v778 = vpop.f32.mrf.mxu0
        %v779 = vadd.f32 0.0, %v778
        %780 = vmatmul.bf16.gmra.mxu0 %v664
        %v781 = vpop.f32.mrf.mxu0
        %v782 = vadd.f32 0.0, %v781
        %v783 = vpop.f32.mrf.mxu0
        %v784 = vadd.f32 0.0, %v783
        %785 = vmatmul.bf16.gmra.mxu0 %v665
        %v786 = vpop.f32.mrf.mxu0
        %v787 = vadd.f32 0.0, %v786
        %v788 = vpop.f32.mrf.mxu0
        %v789 = vadd.f32 0.0, %v788
        %790 = vmatmul.bf16.gmra.mxu0 %v666
        %v791 = vpop.f32.mrf.mxu0
        %v792 = vadd.f32 0.0, %v791
        %v793 = vpop.f32.mrf.mxu0
        %v794 = vadd.f32 0.0, %v793
        %795 = vmatmul.bf16.gmra.mxu0 %v667
        %v796 = vpop.f32.mrf.mxu0
        %v797 = vadd.f32 0.0, %v796
        %v798 = vpop.f32.mrf.mxu0
        %v799 = vadd.f32 0.0, %v798
        %800 = vmatmul.bf16.gmra.mxu0 %v668
        %v801 = vpop.f32.mrf.mxu0
        %v802 = vadd.f32 0.0, %v801
        %v803 = vpop.f32.mrf.mxu0
        %v804 = vadd.f32 0.0, %v803
        %805 = vmatmul.bf16.gmra.mxu0 %v669
        %v806 = vpop.f32.mrf.mxu0
        %v807 = vadd.f32 0.0, %v806
        %v808 = vpop.f32.mrf.mxu0
        %v809 = vadd.f32 0.0, %v808
        %810 = vmatmul.bf16.gmra.mxu0 %v670
        %v811 = vpop.f32.mrf.mxu0
        %v812 = vadd.f32 0.0, %v811
        %v813 = vpop.f32.mrf.mxu0
        %v814 = vadd.f32 0.0, %v813
        %815 = vmatmul.bf16.gmra.mxu0 %v671
        %v816 = vpop.f32.mrf.mxu0
        %v817 = vadd.f32 0.0, %v816
        %v818 = vpop.f32.mrf.mxu0
        %v819 = vadd.f32 0.0, %v818
        %820 = vmatmul.bf16.gmra.mxu0 %v672
        %v821 = vpop.f32.mrf.mxu0
        %v822 = vadd.f32 0.0, %v821
        %v823 = vpop.f32.mrf.mxu0
        %v824 = vadd.f32 0.0, %v823
        %825 = vdwg.mxu0
        %v826 = vld [vmem:[#allocation7] sm:$0x1]
        %v828 = vperm.slane %v826, 0
        %v830 = vmul.f32 %v747, %v828
        %v831 = vmul.f32 %v749, %v828
        %v832 = vmul.f32 %v752, %v828
        %v833 = vmul.f32 %v754, %v828
        %v834 = vmul.f32 %v757, %v828
        %v835 = vmul.f32 %v759, %v828
        %v836 = vmul.f32 %v762, %v828
        %v837 = vmul.f32 %v764, %v828
        %v838 = vmul.f32 %v767, %v828
        %v839 = vmul.f32 %v769, %v828
        %v840 = vmul.f32 %v772, %v828
        %v841 = vmul.f32 %v774, %v828
        %v842 = vmul.f32 %v777, %v828
        %v843 = vmul.f32 %v779, %v828
        %v844 = vmul.f32 %v782, %v828
        %v845 = vmul.f32 %v784, %v828
        %v846 = vmul.f32 %v787, %v828
        %v847 = vmul.f32 %v789, %v828
        %v848 = vmul.f32 %v792, %v828
        %v849 = vmul.f32 %v794, %v828
        %v850 = vmul.f32 %v797, %v828
        %v851 = vmul.f32 %v799, %v828
        %v852 = vmul.f32 %v802, %v828
        %v853 = vmul.f32 %v804, %v828
        %v854 = vmul.f32 %v807, %v828
        %v855 = vmul.f32 %v809, %v828
        %v856 = vmul.f32 %v812, %v828
        %v857 = vmul.f32 %v814, %v828
        %v858 = vmul.f32 %v817, %v828
        %v859 = vmul.f32 %v819, %v828
        %v860 = vmul.f32 %v822, %v828
        %v861 = vmul.f32 %v824, %v828
        %v862 = vld [vmem:[#allocation8] sm:$0x1]
        %v864 = vperm.slane %v862, 0
        %v866 = vadd.f32 %v830, %v864
        %v867 = vadd.f32 %v831, %v864
        %v868 = vadd.f32 %v832, %v864
        %v869 = vadd.f32 %v833, %v864
        %v870 = vadd.f32 %v834, %v864
        %v871 = vadd.f32 %v835, %v864
        %v872 = vadd.f32 %v836, %v864
        %v873 = vadd.f32 %v837, %v864
        %v874 = vadd.f32 %v838, %v864
        %v875 = vadd.f32 %v839, %v864
        %v876 = vadd.f32 %v840, %v864
        %v877 = vadd.f32 %v841, %v864
        %v878 = vadd.f32 %v842, %v864
        %v879 = vadd.f32 %v843, %v864
        %v880 = vadd.f32 %v844, %v864
        %v881 = vadd.f32 %v845, %v864
        %v882 = vadd.f32 %v846, %v864
        %v883 = vadd.f32 %v847, %v864
        %v884 = vadd.f32 %v848, %v864
        %v885 = vadd.f32 %v849, %v864
        %v886 = vadd.f32 %v850, %v864
        %v887 = vadd.f32 %v851, %v864
        %v888 = vadd.f32 %v852, %v864
        %v889 = vadd.f32 %v853, %v864
        %v890 = vadd.f32 %v854, %v864
        %v891 = vadd.f32 %v855, %v864
        %v892 = vadd.f32 %v856, %v864
        %v893 = vadd.f32 %v857, %v864
        %v894 = vadd.f32 %v858, %v864
        %v895 = vadd.f32 %v859, %v864
        %v896 = vadd.f32 %v860, %v864
        %v897 = vadd.f32 %v861, %v864
        %v898 = vmax.f32 %v866, 0.0
        %v899 = vmax.f32 %v867, 0.0
        %v900 = vmax.f32 %v868, 0.0
        %v901 = vmax.f32 %v869, 0.0
        %v902 = vmax.f32 %v870, 0.0
        %v903 = vmax.f32 %v871, 0.0
        %v904 = vmax.f32 %v872, 0.0
        %v905 = vmax.f32 %v873, 0.0
        %v906 = vmax.f32 %v874, 0.0
        %v907 = vmax.f32 %v875, 0.0
        %v908 = vmax.f32 %v876, 0.0
        %v909 = vmax.f32 %v877, 0.0
        %v910 = vmax.f32 %v878, 0.0
        %v911 = vmax.f32 %v879, 0.0
        %v912 = vmax.f32 %v880, 0.0
        %v913 = vmax.f32 %v881, 0.0
        %v914 = vmax.f32 %v882, 0.0
        %v915 = vmax.f32 %v883, 0.0
        %v916 = vmax.f32 %v884, 0.0
        %v917 = vmax.f32 %v885, 0.0
        %v918 = vmax.f32 %v886, 0.0
        %v919 = vmax.f32 %v887, 0.0
        %v920 = vmax.f32 %v888, 0.0
        %v921 = vmax.f32 %v889, 0.0
        %v922 = vmax.f32 %v890, 0.0
        %v923 = vmax.f32 %v891, 0.0
        %v924 = vmax.f32 %v892, 0.0
        %v925 = vmax.f32 %v893, 0.0
        %v926 = vmax.f32 %v894, 0.0
        %v927 = vmax.f32 %v895, 0.0
        %v928 = vmax.f32 %v896, 0.0
        %v929 = vmax.f32 %v897, 0.0
        %v930 = vpack.c.bf16 %v899, %v898
        %v931 = vpack.c.bf16 %v901, %v900
        %v932 = vpack.c.bf16 %v903, %v902
        %v933 = vpack.c.bf16 %v905, %v904
        %v934 = vpack.c.bf16 %v907, %v906
        %v935 = vpack.c.bf16 %v909, %v908
        %v936 = vpack.c.bf16 %v911, %v910
        %v937 = vpack.c.bf16 %v913, %v912
        %v938 = vpack.c.bf16 %v915, %v914
        %v939 = vpack.c.bf16 %v917, %v916
        %v940 = vpack.c.bf16 %v919, %v918
        %v941 = vpack.c.bf16 %v921, %v920
        %v942 = vpack.c.bf16 %v923, %v922
        %v943 = vpack.c.bf16 %v925, %v924
        %v944 = vpack.c.bf16 %v927, %v926
        %v945 = vpack.c.bf16 %v929, %v928
        %v946 = vld [vmem:[#allocation10] sm:$0xff]
        %v947 = vld [vmem:[#allocation10 + $0x8] sm:$0xff]
        %v948 = vld [vmem:[#allocation10 + $0x10] sm:$0xff]
        %v949 = vld [vmem:[#allocation10 + $0x18] sm:$0xff]
        %v950 = vmul.f32 %v898, %v898
        %v951 = vmul.f32 %v899, %v899
        %v952 = vmul.f32 %v900, %v900
        %v953 = vmul.f32 %v901, %v901
        %v954 = vmul.f32 %v902, %v902
        %v955 = vmul.f32 %v903, %v903
        %v956 = vmul.f32 %v904, %v904
        %v957 = vmul.f32 %v905, %v905
        %v958 = vmul.f32 %v906, %v906
        %v959 = vmul.f32 %v907, %v907
        %v960 = vmul.f32 %v908, %v908
        %v961 = vmul.f32 %v909, %v909
        %v962 = vmul.f32 %v910, %v910
        %v963 = vmul.f32 %v911, %v911
        %v964 = vmul.f32 %v912, %v912
        %v965 = vmul.f32 %v913, %v913
        %v966 = vmul.f32 %v914, %v914
        %v967 = vmul.f32 %v915, %v915
        %v968 = vmul.f32 %v916, %v916
        %v969 = vmul.f32 %v917, %v917
        %v970 = vmul.f32 %v918, %v918
        %v971 = vmul.f32 %v919, %v919
        %v972 = vmul.f32 %v920, %v920
        %v973 = vmul.f32 %v921, %v921
        %v974 = vmul.f32 %v922, %v922
        %v975 = vmul.f32 %v923, %v923
        %v976 = vmul.f32 %v924, %v924
        %v977 = vmul.f32 %v925, %v925
        %v978 = vmul.f32 %v926, %v926
        %v979 = vmul.f32 %v927, %v927
        %v980 = vmul.f32 %v928, %v928
        %v981 = vmul.f32 %v929, %v929
        %982 = vadd.xlane.f32.xlu0 %v950
        %v983 = vpop.xlane.xlu0 %982
        %984 = vadd.xlane.f32.xlu0 %v951
        %v985 = vpop.xlane.xlu0 %984
        %986 = vadd.xlane.f32.xlu0 %v952
        %v987 = vpop.xlane.xlu0 %986
        %988 = vadd.xlane.f32.xlu0 %v953
        %v989 = vpop.xlane.xlu0 %988
        %990 = vadd.xlane.f32.xlu0 %v954
        %v991 = vpop.xlane.xlu0 %990
        %992 = vadd.xlane.f32.xlu0 %v955
        %v993 = vpop.xlane.xlu0 %992
        %994 = vadd.xlane.f32.xlu0 %v956
        %v995 = vpop.xlane.xlu0 %994
        %996 = vadd.xlane.f32.xlu0 %v957
        %v997 = vpop.xlane.xlu0 %996
        %998 = vadd.xlane.f32.xlu0 %v958
        %v999 = vpop.xlane.xlu0 %998
        %1000 = vadd.xlane.f32.xlu0 %v959
        %v1001 = vpop.xlane.xlu0 %1000
        %1002 = vadd.xlane.f32.xlu0 %v960
        %v1003 = vpop.xlane.xlu0 %1002
        %1004 = vadd.xlane.f32.xlu0 %v961
        %v1005 = vpop.xlane.xlu0 %1004
        %1006 = vadd.xlane.f32.xlu0 %v962
        %v1007 = vpop.xlane.xlu0 %1006
        %1008 = vadd.xlane.f32.xlu0 %v963
        %v1009 = vpop.xlane.xlu0 %1008
        %1010 = vadd.xlane.f32.xlu0 %v964
        %v1011 = vpop.xlane.xlu0 %1010
        %1012 = vadd.xlane.f32.xlu0 %v965
        %v1013 = vpop.xlane.xlu0 %1012
        %1014 = vadd.xlane.f32.xlu0 %v966
        %v1015 = vpop.xlane.xlu0 %1014
        %1016 = vadd.xlane.f32.xlu0 %v967
        %v1017 = vpop.xlane.xlu0 %1016
        %1018 = vadd.xlane.f32.xlu0 %v968
        %v1019 = vpop.xlane.xlu0 %1018
        %1020 = vadd.xlane.f32.xlu0 %v969
        %v1021 = vpop.xlane.xlu0 %1020
        %1022 = vadd.xlane.f32.xlu0 %v970
        %v1023 = vpop.xlane.xlu0 %1022
        %1024 = vadd.xlane.f32.xlu0 %v971
        %v1025 = vpop.xlane.xlu0 %1024
        %1026 = vadd.xlane.f32.xlu0 %v972
        %v1027 = vpop.xlane.xlu0 %1026
        %1028 = vadd.xlane.f32.xlu0 %v973
        %v1029 = vpop.xlane.xlu0 %1028
        %1030 = vadd.xlane.f32.xlu0 %v974
        %v1031 = vpop.xlane.xlu0 %1030
        %1032 = vadd.xlane.f32.xlu0 %v975
        %v1033 = vpop.xlane.xlu0 %1032
        %1034 = vadd.xlane.f32.xlu0 %v976
        %v1035 = vpop.xlane.xlu0 %1034
        %1036 = vadd.xlane.f32.xlu0 %v977
        %v1037 = vpop.xlane.xlu0 %1036
        %1038 = vadd.xlane.f32.xlu0 %v978
        %v1039 = vpop.xlane.xlu0 %1038
        %1040 = vadd.xlane.f32.xlu0 %v979
        %v1041 = vpop.xlane.xlu0 %1040
        %1042 = vadd.xlane.f32.xlu0 %v980
        %v1043 = vpop.xlane.xlu0 %1042
        %1044 = vadd.xlane.f32.xlu0 %v981
        %v1045 = vpop.xlane.xlu0 %1044
        %v1046 = vpack.c.bf16 %v947, %v946
        %v1047 = vpack.c.bf16 %v949, %v948
        %1048 = vmatpush.bf16.xpose.msra.mxu0 0
        %1049 = vmatpush.bf16.xpose.msra.mxu0 0
        %1050 = vmatpush.bf16.xpose.msra.mxu0 0
        %1051 = vmatpush.bf16.xpose.msra.mxu0 0
        %1052 = vmatpush.bf16.xpose.msra.mxu0 0
        %1053 = vmatpush.bf16.xpose.msra.mxu0 0
        %1054 = vmatpush.bf16.xpose.msra.mxu0 %v1047
        %1055 = vmatpush.bf16.xpose.msra.mxu0 %v1046
        %1056 = vmatmul.bf16.gmra.mxu0 %v930
        %v1057 = vpop.f32.mrf.mxu0
        %v1058 = vadd.f32 0.0, %v1057
        %v1059 = vpop.f32.mrf.mxu0
        %v1060 = vadd.f32 0.0, %v1059
        %1061 = vmatmul.bf16.gmra.mxu0 %v931
        %v1062 = vpop.f32.mrf.mxu0
        %v1063 = vadd.f32 0.0, %v1062
        %v1064 = vpop.f32.mrf.mxu0
        %v1065 = vadd.f32 0.0, %v1064
        %1066 = vmatmul.bf16.gmra.mxu0 %v932
        %v1067 = vpop.f32.mrf.mxu0
        %v1068 = vadd.f32 0.0, %v1067
        %v1069 = vpop.f32.mrf.mxu0
        %v1070 = vadd.f32 0.0, %v1069
        %1071 = vmatmul.bf16.gmra.mxu0 %v933
        %v1072 = vpop.f32.mrf.mxu0
        %v1073 = vadd.f32 0.0, %v1072
        %v1074 = vpop.f32.mrf.mxu0
        %v1075 = vadd.f32 0.0, %v1074
        %1076 = vmatmul.bf16.gmra.mxu0 %v934
        %v1077 = vpop.f32.mrf.mxu0
        %v1078 = vadd.f32 0.0, %v1077
        %v1079 = vpop.f32.mrf.mxu0
        %v1080 = vadd.f32 0.0, %v1079
        %1081 = vmatmul.bf16.gmra.mxu0 %v935
        %v1082 = vpop.f32.mrf.mxu0
        %v1083 = vadd.f32 0.0, %v1082
        %v1084 = vpop.f32.mrf.mxu0
        %v1085 = vadd.f32 0.0, %v1084
        %1086 = vmatmul.bf16.gmra.mxu0 %v936
        %v1087 = vpop.f32.mrf.mxu0
        %v1088 = vadd.f32 0.0, %v1087
        %v1089 = vpop.f32.mrf.mxu0
        %v1090 = vadd.f32 0.0, %v1089
        %1091 = vmatmul.bf16.gmra.mxu0 %v937
        %v1092 = vpop.f32.mrf.mxu0
        %v1093 = vadd.f32 0.0, %v1092
        %v1094 = vpop.f32.mrf.mxu0
        %v1095 = vadd.f32 0.0, %v1094
        %1096 = vmatmul.bf16.gmra.mxu0 %v938
        %v1097 = vpop.f32.mrf.mxu0
        %v1098 = vadd.f32 0.0, %v1097
        %v1099 = vpop.f32.mrf.mxu0
        %v1100 = vadd.f32 0.0, %v1099
        %1101 = vmatmul.bf16.gmra.mxu0 %v939
        %v1102 = vpop.f32.mrf.mxu0
        %v1103 = vadd.f32 0.0, %v1102
        %v1104 = vpop.f32.mrf.mxu0
        %v1105 = vadd.f32 0.0, %v1104
        %1106 = vmatmul.bf16.gmra.mxu0 %v940
        %v1107 = vpop.f32.mrf.mxu0
        %v1108 = vadd.f32 0.0, %v1107
        %v1109 = vpop.f32.mrf.mxu0
        %v1110 = vadd.f32 0.0, %v1109
        %1111 = vmatmul.bf16.gmra.mxu0 %v941
        %v1112 = vpop.f32.mrf.mxu0
        %v1113 = vadd.f32 0.0, %v1112
        %v1114 = vpop.f32.mrf.mxu0
        %v1115 = vadd.f32 0.0, %v1114
        %1116 = vmatmul.bf16.gmra.mxu0 %v942
        %v1117 = vpop.f32.mrf.mxu0
        %v1118 = vadd.f32 0.0, %v1117
        %v1119 = vpop.f32.mrf.mxu0
        %v1120 = vadd.f32 0.0, %v1119
        %1121 = vmatmul.bf16.gmra.mxu0 %v943
        %v1122 = vpop.f32.mrf.mxu0
        %v1123 = vadd.f32 0.0, %v1122
        %v1124 = vpop.f32.mrf.mxu0
        %v1125 = vadd.f32 0.0, %v1124
        %1126 = vmatmul.bf16.gmra.mxu0 %v944
        %v1127 = vpop.f32.mrf.mxu0
        %v1128 = vadd.f32 0.0, %v1127
        %v1129 = vpop.f32.mrf.mxu0
        %v1130 = vadd.f32 0.0, %v1129
        %1131 = vmatmul.bf16.gmra.mxu0 %v945
        %v1132 = vpop.f32.mrf.mxu0
        %v1133 = vadd.f32 0.0, %v1132
        %v1134 = vpop.f32.mrf.mxu0
        %v1135 = vadd.f32 0.0, %v1134
        %1136 = vdwg.mxu0
        %v1137 = vmul.f32 %v1058, 2.0
        %v1138 = vmul.f32 %v1060, 2.0
        %v1139 = vmul.f32 %v1063, 2.0
        %v1140 = vmul.f32 %v1065, 2.0
        %v1141 = vmul.f32 %v1068, 2.0
        %v1142 = vmul.f32 %v1070, 2.0
        %v1143 = vmul.f32 %v1073, 2.0
        %v1144 = vmul.f32 %v1075, 2.0
        %v1145 = vmul.f32 %v1078, 2.0
        %v1146 = vmul.f32 %v1080, 2.0
        %v1147 = vmul.f32 %v1083, 2.0
        %v1148 = vmul.f32 %v1085, 2.0
        %v1149 = vmul.f32 %v1088, 2.0
        %v1150 = vmul.f32 %v1090, 2.0
        %v1151 = vmul.f32 %v1093, 2.0
        %v1152 = vmul.f32 %v1095, 2.0
        %v1153 = vmul.f32 %v1098, 2.0
        %v1154 = vmul.f32 %v1100, 2.0
        %v1155 = vmul.f32 %v1103, 2.0
        %v1156 = vmul.f32 %v1105, 2.0
        %v1157 = vmul.f32 %v1108, 2.0
        %v1158 = vmul.f32 %v1110, 2.0
        %v1159 = vmul.f32 %v1113, 2.0
        %v1160 = vmul.f32 %v1115, 2.0
        %v1161 = vmul.f32 %v1118, 2.0
        %v1162 = vmul.f32 %v1120, 2.0
        %v1163 = vmul.f32 %v1123, 2.0
        %v1164 = vmul.f32 %v1125, 2.0
        %v1165 = vmul.f32 %v1128, 2.0
        %v1166 = vmul.f32 %v1130, 2.0
        %v1167 = vmul.f32 %v1133, 2.0
        %v1168 = vmul.f32 %v1135, 2.0
        %v1169 = vsub.f32 %v983, %v1137
        %v1170 = vsub.f32 %v985, %v1138
        %v1171 = vsub.f32 %v987, %v1139
        %v1172 = vsub.f32 %v989, %v1140
        %v1173 = vsub.f32 %v991, %v1141
        %v1174 = vsub.f32 %v993, %v1142
        %v1175 = vsub.f32 %v995, %v1143
        %v1176 = vsub.f32 %v997, %v1144
        %v1177 = vsub.f32 %v999, %v1145
        %v1178 = vsub.f32 %v1001, %v1146
        %v1179 = vsub.f32 %v1003, %v1147
        %v1180 = vsub.f32 %v1005, %v1148
        %v1181 = vsub.f32 %v1007, %v1149
        %v1182 = vsub.f32 %v1009, %v1150
        %v1183 = vsub.f32 %v1011, %v1151
        %v1184 = vsub.f32 %v1013, %v1152
        %v1185 = vsub.f32 %v1015, %v1153
        %v1186 = vsub.f32 %v1017, %v1154
        %v1187 = vsub.f32 %v1019, %v1155
        %v1188 = vsub.f32 %v1021, %v1156
        %v1189 = vsub.f32 %v1023, %v1157
        %v1190 = vsub.f32 %v1025, %v1158
        %v1191 = vsub.f32 %v1027, %v1159
        %v1192 = vsub.f32 %v1029, %v1160
        %v1193 = vsub.f32 %v1031, %v1161
        %v1194 = vsub.f32 %v1033, %v1162
        %v1195 = vsub.f32 %v1035, %v1163
        %v1196 = vsub.f32 %v1037, %v1164
        %v1197 = vsub.f32 %v1039, %v1165
        %v1198 = vsub.f32 %v1041, %v1166
        %v1199 = vsub.f32 %v1043, %v1167
        %v1200 = vsub.f32 %v1045, %v1168
        %v1201 = vld [vmem:[%s5] sm:$0x1]
        %v1203 = vperm.slane %v1201, 0
        %v1205 = vmul.f32 %v1169, %v1203
        %v1206 = vmul.f32 %v1170, %v1203
        %v1207 = vmul.f32 %v1171, %v1203
        %v1208 = vmul.f32 %v1172, %v1203
        %v1209 = vmul.f32 %v1173, %v1203
        %v1210 = vmul.f32 %v1174, %v1203
        %v1211 = vmul.f32 %v1175, %v1203
        %v1212 = vmul.f32 %v1176, %v1203
        %v1213 = vmul.f32 %v1177, %v1203
        %v1214 = vmul.f32 %v1178, %v1203
        %v1215 = vmul.f32 %v1179, %v1203
        %v1216 = vmul.f32 %v1180, %v1203
        %v1217 = vmul.f32 %v1181, %v1203
        %v1218 = vmul.f32 %v1182, %v1203
        %v1219 = vmul.f32 %v1183, %v1203
        %v1220 = vmul.f32 %v1184, %v1203
        %v1221 = vmul.f32 %v1185, %v1203
        %v1222 = vmul.f32 %v1186, %v1203
        %v1223 = vmul.f32 %v1187, %v1203
        %v1224 = vmul.f32 %v1188, %v1203
        %v1225 = vmul.f32 %v1189, %v1203
        %v1226 = vmul.f32 %v1190, %v1203
        %v1227 = vmul.f32 %v1191, %v1203
        %v1228 = vmul.f32 %v1192, %v1203
        %v1229 = vmul.f32 %v1193, %v1203
        %v1230 = vmul.f32 %v1194, %v1203
        %v1231 = vmul.f32 %v1195, %v1203
        %v1232 = vmul.f32 %v1196, %v1203
        %v1233 = vmul.f32 %v1197, %v1203
        %v1234 = vmul.f32 %v1198, %v1203
        %v1235 = vmul.f32 %v1199, %v1203
        %v1236 = vmul.f32 %v1200, %v1203
        %v1237 = vld [vmem:[%s6] sm:$0x1]
        %v1239 = vperm.slane %v1237, 0
        %v1241 = vadd.f32 %v1205, %v1239
        %v1242 = vadd.f32 %v1206, %v1239
        %v1243 = vadd.f32 %v1207, %v1239
        %v1244 = vadd.f32 %v1208, %v1239
        %v1245 = vadd.f32 %v1209, %v1239
        %v1246 = vadd.f32 %v1210, %v1239
        %v1247 = vadd.f32 %v1211, %v1239
        %v1248 = vadd.f32 %v1212, %v1239
        %v1249 = vadd.f32 %v1213, %v1239
        %v1250 = vadd.f32 %v1214, %v1239
        %v1251 = vadd.f32 %v1215, %v1239
        %v1252 = vadd.f32 %v1216, %v1239
        %v1253 = vadd.f32 %v1217, %v1239
        %v1254 = vadd.f32 %v1218, %v1239
        %v1255 = vadd.f32 %v1219, %v1239
        %v1256 = vadd.f32 %v1220, %v1239
        %v1257 = vadd.f32 %v1221, %v1239
        %v1258 = vadd.f32 %v1222, %v1239
        %v1259 = vadd.f32 %v1223, %v1239
        %v1260 = vadd.f32 %v1224, %v1239
        %v1261 = vadd.f32 %v1225, %v1239
        %v1262 = vadd.f32 %v1226, %v1239
        %v1263 = vadd.f32 %v1227, %v1239
        %v1264 = vadd.f32 %v1228, %v1239
        %v1265 = vadd.f32 %v1229, %v1239
        %v1266 = vadd.f32 %v1230, %v1239
        %v1267 = vadd.f32 %v1231, %v1239
        %v1268 = vadd.f32 %v1232, %v1239
        %v1269 = vadd.f32 %v1233, %v1239
        %v1270 = vadd.f32 %v1234, %v1239
        %v1271 = vadd.f32 %v1235, %v1239
        %v1272 = vadd.f32 %v1236, %v1239
        %vm1273 = vcmask 261120
        %v1274 = vsel %vm1273, %v1241, -inf
        %1275 = vmax.xlane.f32.xlu0 %v1274
        %v1276 = vpop.xlane.xlu0 %1275
        %v1277 = vsel %vm1273, %v1242, -inf
        %1278 = vmax.xlane.f32.xlu0 %v1277
        %v1279 = vpop.xlane.xlu0 %1278
        %v1280 = vsel %vm1273, %v1243, -inf
        %1281 = vmax.xlane.f32.xlu0 %v1280
        %v1282 = vpop.xlane.xlu0 %1281
        %v1283 = vsel %vm1273, %v1244, -inf
        %1284 = vmax.xlane.f32.xlu0 %v1283
        %v1285 = vpop.xlane.xlu0 %1284
        %v1286 = vsel %vm1273, %v1245, -inf
        %1287 = vmax.xlane.f32.xlu0 %v1286
        %v1288 = vpop.xlane.xlu0 %1287
        %v1289 = vsel %vm1273, %v1246, -inf
        %1290 = vmax.xlane.f32.xlu0 %v1289
        %v1291 = vpop.xlane.xlu0 %1290
        %v1292 = vsel %vm1273, %v1247, -inf
        %1293 = vmax.xlane.f32.xlu0 %v1292
        %v1294 = vpop.xlane.xlu0 %1293
        %v1295 = vsel %vm1273, %v1248, -inf
        %1296 = vmax.xlane.f32.xlu0 %v1295
        %v1297 = vpop.xlane.xlu0 %1296
        %v1298 = vsel %vm1273, %v1249, -inf
        %1299 = vmax.xlane.f32.xlu0 %v1298
        %v1300 = vpop.xlane.xlu0 %1299
        %v1301 = vsel %vm1273, %v1250, -inf
        %1302 = vmax.xlane.f32.xlu0 %v1301
        %v1303 = vpop.xlane.xlu0 %1302
        %v1304 = vsel %vm1273, %v1251, -inf
        %1305 = vmax.xlane.f32.xlu0 %v1304
        %v1306 = vpop.xlane.xlu0 %1305
        %v1307 = vsel %vm1273, %v1252, -inf
        %1308 = vmax.xlane.f32.xlu0 %v1307
        %v1309 = vpop.xlane.xlu0 %1308
        %v1310 = vsel %vm1273, %v1253, -inf
        %1311 = vmax.xlane.f32.xlu0 %v1310
        %v1312 = vpop.xlane.xlu0 %1311
        %v1313 = vsel %vm1273, %v1254, -inf
        %1314 = vmax.xlane.f32.xlu0 %v1313
        %v1315 = vpop.xlane.xlu0 %1314
        %v1316 = vsel %vm1273, %v1255, -inf
        %1317 = vmax.xlane.f32.xlu0 %v1316
        %v1318 = vpop.xlane.xlu0 %1317
        %v1319 = vsel %vm1273, %v1256, -inf
        %1320 = vmax.xlane.f32.xlu0 %v1319
        %v1321 = vpop.xlane.xlu0 %1320
        %v1322 = vsel %vm1273, %v1257, -inf
        %1323 = vmax.xlane.f32.xlu0 %v1322
        %v1324 = vpop.xlane.xlu0 %1323
        %v1325 = vsel %vm1273, %v1258, -inf
        %1326 = vmax.xlane.f32.xlu0 %v1325
        %v1327 = vpop.xlane.xlu0 %1326
        %v1328 = vsel %vm1273, %v1259, -inf
        %1329 = vmax.xlane.f32.xlu0 %v1328
        %v1330 = vpop.xlane.xlu0 %1329
        %v1331 = vsel %vm1273, %v1260, -inf
        %1332 = vmax.xlane.f32.xlu0 %v1331
        %v1333 = vpop.xlane.xlu0 %1332
        %v1334 = vsel %vm1273, %v1261, -inf
        %1335 = vmax.xlane.f32.xlu0 %v1334
        %v1336 = vpop.xlane.xlu0 %1335
        %v1337 = vsel %vm1273, %v1262, -inf
        %1338 = vmax.xlane.f32.xlu0 %v1337
        %v1339 = vpop.xlane.xlu0 %1338
        %v1340 = vsel %vm1273, %v1263, -inf
        %1341 = vmax.xlane.f32.xlu0 %v1340
        %v1342 = vpop.xlane.xlu0 %1341
        %v1343 = vsel %vm1273, %v1264, -inf
        %1344 = vmax.xlane.f32.xlu0 %v1343
        %v1345 = vpop.xlane.xlu0 %1344
        %v1346 = vsel %vm1273, %v1265, -inf
        %1347 = vmax.xlane.f32.xlu0 %v1346
        %v1348 = vpop.xlane.xlu0 %1347
        %v1349 = vsel %vm1273, %v1266, -inf
        %1350 = vmax.xlane.f32.xlu0 %v1349
        %v1351 = vpop.xlane.xlu0 %1350
        %v1352 = vsel %vm1273, %v1267, -inf
        %1353 = vmax.xlane.f32.xlu0 %v1352
        %v1354 = vpop.xlane.xlu0 %1353
        %v1355 = vsel %vm1273, %v1268, -inf
        %1356 = vmax.xlane.f32.xlu0 %v1355
        %v1357 = vpop.xlane.xlu0 %1356
        %v1358 = vsel %vm1273, %v1269, -inf
        %1359 = vmax.xlane.f32.xlu0 %v1358
        %v1360 = vpop.xlane.xlu0 %1359
        %v1361 = vsel %vm1273, %v1270, -inf
        %1362 = vmax.xlane.f32.xlu0 %v1361
        %v1363 = vpop.xlane.xlu0 %1362
        %v1364 = vsel %vm1273, %v1271, -inf
        %1365 = vmax.xlane.f32.xlu0 %v1364
        %v1366 = vpop.xlane.xlu0 %1365
        %v1367 = vsel %vm1273, %v1272, -inf
        %1368 = vmax.xlane.f32.xlu0 %v1367
        %v1369 = vpop.xlane.xlu0 %1368
        %v1370 = vsub.f32 %v1241, %v1276
        %v1371 = vsub.f32 %v1242, %v1279
        %v1372 = vsub.f32 %v1243, %v1282
        %v1373 = vsub.f32 %v1244, %v1285
        %v1374 = vsub.f32 %v1245, %v1288
        %v1375 = vsub.f32 %v1246, %v1291
        %v1376 = vsub.f32 %v1247, %v1294
        %v1377 = vsub.f32 %v1248, %v1297
        %v1378 = vsub.f32 %v1249, %v1300
        %v1379 = vsub.f32 %v1250, %v1303
        %v1380 = vsub.f32 %v1251, %v1306
        %v1381 = vsub.f32 %v1252, %v1309
        %v1382 = vsub.f32 %v1253, %v1312
        %v1383 = vsub.f32 %v1254, %v1315
        %v1384 = vsub.f32 %v1255, %v1318
        %v1385 = vsub.f32 %v1256, %v1321
        %v1386 = vsub.f32 %v1257, %v1324
        %v1387 = vsub.f32 %v1258, %v1327
        %v1388 = vsub.f32 %v1259, %v1330
        %v1389 = vsub.f32 %v1260, %v1333
        %v1390 = vsub.f32 %v1261, %v1336
        %v1391 = vsub.f32 %v1262, %v1339
        %v1392 = vsub.f32 %v1263, %v1342
        %v1393 = vsub.f32 %v1264, %v1345
        %v1394 = vsub.f32 %v1265, %v1348
        %v1395 = vsub.f32 %v1266, %v1351
        %v1396 = vsub.f32 %v1267, %v1354
        %v1397 = vsub.f32 %v1268, %v1357
        %v1398 = vsub.f32 %v1269, %v1360
        %v1399 = vsub.f32 %v1270, %v1363
        %v1400 = vsub.f32 %v1271, %v1366
        %v1401 = vsub.f32 %v1272, %v1369
        %v1402 = vmul.f32 %v1370, 1.442695
        %v1403 = vpow.pop %v1402
        %v1404 = vmul.f32 %v1371, 1.442695
        %v1405 = vpow.pop %v1404
        %v1406 = vmul.f32 %v1372, 1.442695
        %v1407 = vpow.pop %v1406
        %v1408 = vmul.f32 %v1373, 1.442695
        %v1409 = vpow.pop %v1408
        %v1410 = vmul.f32 %v1374, 1.442695
        %v1411 = vpow.pop %v1410
        %v1412 = vmul.f32 %v1375, 1.442695
        %v1413 = vpow.pop %v1412
        %v1414 = vmul.f32 %v1376, 1.442695
        %v1415 = vpow.pop %v1414
        %v1416 = vmul.f32 %v1377, 1.442695
        %v1417 = vpow.pop %v1416
        %v1418 = vmul.f32 %v1378, 1.442695
        %v1419 = vpow.pop %v1418
        %v1420 = vmul.f32 %v1379, 1.442695
        %v1421 = vpow.pop %v1420
        %v1422 = vmul.f32 %v1380, 1.442695
        %v1423 = vpow.pop %v1422
        %v1424 = vmul.f32 %v1381, 1.442695
        %v1425 = vpow.pop %v1424
        %v1426 = vmul.f32 %v1382, 1.442695
        %v1427 = vpow.pop %v1426
        %v1428 = vmul.f32 %v1383, 1.442695
        %v1429 = vpow.pop %v1428
        %v1430 = vmul.f32 %v1384, 1.442695
        %v1431 = vpow.pop %v1430
        %v1432 = vmul.f32 %v1385, 1.442695
        %v1433 = vpow.pop %v1432
        %v1434 = vmul.f32 %v1386, 1.442695
        %v1435 = vpow.pop %v1434
        %v1436 = vmul.f32 %v1387, 1.442695
        %v1437 = vpow.pop %v1436
        %v1438 = vmul.f32 %v1388, 1.442695
        %v1439 = vpow.pop %v1438
        %v1440 = vmul.f32 %v1389, 1.442695
        %v1441 = vpow.pop %v1440
        %v1442 = vmul.f32 %v1390, 1.442695
        %v1443 = vpow.pop %v1442
        %v1444 = vmul.f32 %v1391, 1.442695
        %v1445 = vpow.pop %v1444
        %v1446 = vmul.f32 %v1392, 1.442695
        %v1447 = vpow.pop %v1446
        %v1448 = vmul.f32 %v1393, 1.442695
        %v1449 = vpow.pop %v1448
        %v1450 = vmul.f32 %v1394, 1.442695
        %v1451 = vpow.pop %v1450
        %v1452 = vmul.f32 %v1395, 1.442695
        %v1453 = vpow.pop %v1452
        %v1454 = vmul.f32 %v1396, 1.442695
        %v1455 = vpow.pop %v1454
        %v1456 = vmul.f32 %v1397, 1.442695
        %v1457 = vpow.pop %v1456
        %v1458 = vmul.f32 %v1398, 1.442695
        %v1459 = vpow.pop %v1458
        %v1460 = vmul.f32 %v1399, 1.442695
        %v1461 = vpow.pop %v1460
        %v1462 = vmul.f32 %v1400, 1.442695
        %v1463 = vpow.pop %v1462
        %v1464 = vmul.f32 %v1401, 1.442695
        %v1465 = vpow.pop %v1464
        %v1466 = vsel %vm1273, %v1403, 0.0
        %1467 = vadd.xlane.f32.xlu0 %v1466
        %v1468 = vpop.xlane.xlu0 %1467
        %v1469 = vsel %vm1273, %v1405, 0.0
        %1470 = vadd.xlane.f32.xlu0 %v1469
        %v1471 = vpop.xlane.xlu0 %1470
        %v1472 = vsel %vm1273, %v1407, 0.0
        %1473 = vadd.xlane.f32.xlu0 %v1472
        %v1474 = vpop.xlane.xlu0 %1473
        %v1475 = vsel %vm1273, %v1409, 0.0
        %1476 = vadd.xlane.f32.xlu0 %v1475
        %v1477 = vpop.xlane.xlu0 %1476
        %v1478 = vsel %vm1273, %v1411, 0.0
        %1479 = vadd.xlane.f32.xlu0 %v1478
        %v1480 = vpop.xlane.xlu0 %1479
        %v1481 = vsel %vm1273, %v1413, 0.0
        %1482 = vadd.xlane.f32.xlu0 %v1481
        %v1483 = vpop.xlane.xlu0 %1482
        %v1484 = vsel %vm1273, %v1415, 0.0
        %1485 = vadd.xlane.f32.xlu0 %v1484
        %v1486 = vpop.xlane.xlu0 %1485
        %v1487 = vsel %vm1273, %v1417, 0.0
        %1488 = vadd.xlane.f32.xlu0 %v1487
        %v1489 = vpop.xlane.xlu0 %1488
        %v1490 = vsel %vm1273, %v1419, 0.0
        %1491 = vadd.xlane.f32.xlu0 %v1490
        %v1492 = vpop.xlane.xlu0 %1491
        %v1493 = vsel %vm1273, %v1421, 0.0
        %1494 = vadd.xlane.f32.xlu0 %v1493
        %v1495 = vpop.xlane.xlu0 %1494
        %v1496 = vsel %vm1273, %v1423, 0.0
        %1497 = vadd.xlane.f32.xlu0 %v1496
        %v1498 = vpop.xlane.xlu0 %1497
        %v1499 = vsel %vm1273, %v1425, 0.0
        %1500 = vadd.xlane.f32.xlu0 %v1499
        %v1501 = vpop.xlane.xlu0 %1500
        %v1502 = vsel %vm1273, %v1427, 0.0
        %1503 = vadd.xlane.f32.xlu0 %v1502
        %v1504 = vpop.xlane.xlu0 %1503
        %v1505 = vsel %vm1273, %v1429, 0.0
        %1506 = vadd.xlane.f32.xlu0 %v1505
        %v1507 = vpop.xlane.xlu0 %1506
        %v1508 = vsel %vm1273, %v1431, 0.0
        %1509 = vadd.xlane.f32.xlu0 %v1508
        %v1510 = vpop.xlane.xlu0 %1509
        %v1511 = vsel %vm1273, %v1433, 0.0
        %1512 = vadd.xlane.f32.xlu0 %v1511
        %v1513 = vpop.xlane.xlu0 %1512
        %v1514 = vsel %vm1273, %v1435, 0.0
        %1515 = vadd.xlane.f32.xlu0 %v1514
        %v1516 = vpop.xlane.xlu0 %1515
        %v1517 = vsel %vm1273, %v1437, 0.0
        %1518 = vadd.xlane.f32.xlu0 %v1517
        %v1519 = vpop.xlane.xlu0 %1518
        %v1520 = vsel %vm1273, %v1439, 0.0
        %1521 = vadd.xlane.f32.xlu0 %v1520
        %v1522 = vpop.xlane.xlu0 %1521
        %v1523 = vsel %vm1273, %v1441, 0.0
        %1524 = vadd.xlane.f32.xlu0 %v1523
        %v1525 = vpop.xlane.xlu0 %1524
        %v1526 = vsel %vm1273, %v1443, 0.0
        %1527 = vadd.xlane.f32.xlu0 %v1526
        %v1528 = vpop.xlane.xlu0 %1527
        %v1529 = vsel %vm1273, %v1445, 0.0
        %1530 = vadd.xlane.f32.xlu0 %v1529
        %v1531 = vpop.xlane.xlu0 %1530
        %v1532 = vsel %vm1273, %v1447, 0.0
        %1533 = vadd.xlane.f32.xlu0 %v1532
        %v1534 = vpop.xlane.xlu0 %1533
        %v1535 = vsel %vm1273, %v1449, 0.0
        %1536 = vadd.xlane.f32.xlu0 %v1535
        %v1537 = vpop.xlane.xlu0 %1536
        %v1538 = vsel %vm1273, %v1451, 0.0
        %1539 = vadd.xlane.f32.xlu0 %v1538
        %v1540 = vpop.xlane.xlu0 %1539
        %v1541 = vsel %vm1273, %v1453, 0.0
        %1542 = vadd.xlane.f32.xlu0 %v1541
        %v1543 = vpop.xlane.xlu0 %1542
        %v1544 = vsel %vm1273, %v1455, 0.0
        %1545 = vadd.xlane.f32.xlu0 %v1544
        %v1546 = vpop.xlane.xlu0 %1545
        %v1547 = vsel %vm1273, %v1457, 0.0
        %1548 = vadd.xlane.f32.xlu0 %v1547
        %v1549 = vpop.xlane.xlu0 %1548
        %v1550 = vsel %vm1273, %v1459, 0.0
        %1551 = vadd.xlane.f32.xlu0 %v1550
        %v1552 = vpop.xlane.xlu0 %1551
        %v1553 = vsel %vm1273, %v1461, 0.0
        %1554 = vadd.xlane.f32.xlu0 %v1553
        %v1555 = vpop.xlane.xlu0 %1554
        %v1556 = vsel %vm1273, %v1463, 0.0
        %1557 = vadd.xlane.f32.xlu0 %v1556
        %v1558 = vpop.xlane.xlu0 %1557
        %v1559 = vsel %vm1273, %v1465, 0.0
        %1560 = vadd.xlane.f32.xlu0 %v1559
        %v1561 = vpop.xlane.xlu0 %1560
        %v1562 = vrcp.pop %v1468
        %v1563 = vrcp.pop %v1471
        %v1564 = vrcp.pop %v1474
        %v1565 = vrcp.pop %v1477
        %v1566 = vrcp.pop %v1480
        %v1567 = vrcp.pop %v1483
        %v1568 = vrcp.pop %v1486
        %v1569 = vrcp.pop %v1489
        %v1570 = vrcp.pop %v1492
        %v1571 = vrcp.pop %v1495
        %v1572 = vrcp.pop %v1498
        %v1573 = vrcp.pop %v1501
        %v1574 = vrcp.pop %v1504
        %v1575 = vrcp.pop %v1507
        %v1576 = vrcp.pop %v1510
        %v1577 = vrcp.pop %v1513
        %v1578 = vrcp.pop %v1516
        %v1579 = vrcp.pop %v1519
        %v1580 = vrcp.pop %v1522
        %v1581 = vrcp.pop %v1525
        %v1582 = vrcp.pop %v1528
        %v1583 = vrcp.pop %v1531
        %v1584 = vrcp.pop %v1534
        %v1585 = vrcp.pop %v1537
        %v1586 = vrcp.pop %v1540
        %v1587 = vrcp.pop %v1543
        %v1588 = vrcp.pop %v1546
        %v1589 = vrcp.pop %v1549
        %v1590 = vrcp.pop %v1552
        %v1591 = vrcp.pop %v1555
        %v1592 = vrcp.pop %v1558
        %v1593 = vrcp.pop %v1561
        %v1594 = vmul.f32 %v1403, %v1562
        %v1595 = vmul.f32 %v1405, %v1563
        %v1596 = vmul.f32 %v1407, %v1564
        %v1597 = vmul.f32 %v1409, %v1565
        %v1598 = vmul.f32 %v1411, %v1566
        %v1599 = vmul.f32 %v1413, %v1567
        %v1600 = vmul.f32 %v1415, %v1568
        %v1601 = vmul.f32 %v1417, %v1569
        %v1602 = vmul.f32 %v1419, %v1570
        %v1603 = vmul.f32 %v1421, %v1571
        %v1604 = vmul.f32 %v1423, %v1572
        %v1605 = vmul.f32 %v1425, %v1573
        %v1606 = vmul.f32 %v1427, %v1574
        %v1607 = vmul.f32 %v1429, %v1575
        %v1608 = vmul.f32 %v1431, %v1576
        %v1609 = vmul.f32 %v1433, %v1577
        %v1610 = vmul.f32 %v1435, %v1578
        %v1611 = vmul.f32 %v1437, %v1579
        %v1612 = vmul.f32 %v1439, %v1580
        %v1613 = vmul.f32 %v1441, %v1581
        %v1614 = vmul.f32 %v1443, %v1582
        %v1615 = vmul.f32 %v1445, %v1583
        %v1616 = vmul.f32 %v1447, %v1584
        %v1617 = vmul.f32 %v1449, %v1585
        %v1618 = vmul.f32 %v1451, %v1586
        %v1619 = vmul.f32 %v1453, %v1587
        %v1620 = vmul.f32 %v1455, %v1588
        %v1621 = vmul.f32 %v1457, %v1589
        %v1622 = vmul.f32 %v1459, %v1590
        %v1623 = vmul.f32 %v1461, %v1591
        %v1624 = vmul.f32 %v1463, %v1592
        %v1625 = vmul.f32 %v1465, %v1593
        %v1626 = vpack.c.bf16 %v1595, %v1594
        %v1627 = vpack.c.bf16 %v1597, %v1596
        %v1628 = vpack.c.bf16 %v1599, %v1598
        %v1629 = vpack.c.bf16 %v1601, %v1600
        %v1630 = vpack.c.bf16 %v1603, %v1602
        %v1631 = vpack.c.bf16 %v1605, %v1604
        %v1632 = vpack.c.bf16 %v1607, %v1606
        %v1633 = vpack.c.bf16 %v1609, %v1608
        %v1634 = vpack.c.bf16 %v1611, %v1610
        %v1635 = vpack.c.bf16 %v1613, %v1612
        %v1636 = vpack.c.bf16 %v1615, %v1614
        %v1637 = vpack.c.bf16 %v1617, %v1616
        %v1638 = vpack.c.bf16 %v1619, %v1618
        %v1639 = vpack.c.bf16 %v1621, %v1620
        %v1640 = vpack.c.bf16 %v1623, %v1622
        %v1641 = vpack.c.bf16 %v1625, %v1624
        %1642 = vxpose.xlu0.c.b16.start [1/8] %v1626, 128
        %1643 = vxpose.xlu0.c.b16.cont [2/8] %v1627, 128
        %1644 = vxpose.xlu0.c.b16.cont [3/8] %v1628, 128
        %1645 = vxpose.xlu0.c.b16.cont [4/8] %v1629, 128
        %1646 = vxpose.xlu0.c.b16.cont [5/8] %v1630, 128
        %1647 = vxpose.xlu0.c.b16.cont [6/8] %v1631, 128
        %1648 = vxpose.xlu0.c.b16.cont [7/8] %v1632, 128
        %1649 = vxpose.xlu0.c.b16.end [8/8] %v1633, 128
        %v1650 = vpop.trf.xlu0
        %v1651 = vpop.trf.xlu0
        %v1652 = vpop.trf.xlu0
        %v1653 = vpop.trf.xlu0
        %v1654 = vpop.trf.xlu0
        %v1655 = vpop.trf.xlu0
        %v1656 = vpop.trf.xlu0
        %v1657 = vpop.trf.xlu0
        %1658 = vxpose.xlu0.c.b16.start [1/8] %v1634, 128
        %1659 = vxpose.xlu0.c.b16.cont [2/8] %v1635, 128
        %1660 = vxpose.xlu0.c.b16.cont [3/8] %v1636, 128
        %1661 = vxpose.xlu0.c.b16.cont [4/8] %v1637, 128
        %1662 = vxpose.xlu0.c.b16.cont [5/8] %v1638, 128
        %1663 = vxpose.xlu0.c.b16.cont [6/8] %v1639, 128
        %1664 = vxpose.xlu0.c.b16.cont [7/8] %v1640, 128
        %1665 = vxpose.xlu0.c.b16.end [8/8] %v1641, 128
        %v1666 = vpop.trf.xlu0
        %v1667 = vpop.trf.xlu0
        %v1668 = vpop.trf.xlu0
        %v1669 = vpop.trf.xlu0
        %v1670 = vpop.trf.xlu0
        %v1671 = vpop.trf.xlu0
        %v1672 = vpop.trf.xlu0
        %v1673 = vpop.trf.xlu0
        %1674 = vmatpush.bf16.msra.mxu0 %v937
        %1675 = vmatpush.bf16.msra.mxu0 %v936
        %1676 = vmatpush.bf16.msra.mxu0 %v935
        %1677 = vmatpush.bf16.msra.mxu0 %v934
        %1678 = vmatpush.bf16.msra.mxu0 %v933
        %1679 = vmatpush.bf16.msra.mxu0 %v932
        %1680 = vmatpush.bf16.msra.mxu0 %v931
        %1681 = vmatpush.bf16.msra.mxu0 %v930
        %1682 = vmatmul.bf16.gmra.mxu0 %v1650
        %v1683 = vpop.f32.mrf.mxu0
        %v1684 = vadd.f32 0.0, %v1683
        %v1685 = vpop.f32.mrf.mxu0
        %v1686 = vadd.f32 0.0, %v1685
        %1687 = vmatmul.bf16.gmra.mxu0 %v1651
        %v1688 = vpop.f32.mrf.mxu0
        %v1689 = vadd.f32 0.0, %v1688
        %v1690 = vpop.f32.mrf.mxu0
        %v1691 = vadd.f32 0.0, %v1690
        %1692 = vdwg.mxu0
        %1693 = vmatpush.bf16.msra.mxu0 %v945
        %1694 = vmatpush.bf16.msra.mxu0 %v944
        %1695 = vmatpush.bf16.msra.mxu0 %v943
        %1696 = vmatpush.bf16.msra.mxu0 %v942
        %1697 = vmatpush.bf16.msra.mxu0 %v941
        %1698 = vmatpush.bf16.msra.mxu0 %v940
        %1699 = vmatpush.bf16.msra.mxu0 %v939
        %1700 = vmatpush.bf16.msra.mxu0 %v938
        %1701 = vmatmul.bf16.gmra.mxu0 %v1666
        %v1702 = vpop.f32.mrf.mxu0
        %v1703 = vadd.f32 %v1684, %v1702
        %v1704 = vpop.f32.mrf.mxu0
        %v1705 = vadd.f32 %v1686, %v1704
        %1706 = vmatmul.bf16.gmra.mxu0 %v1667
        %v1707 = vpop.f32.mrf.mxu0
        %v1708 = vadd.f32 %v1689, %v1707
        %v1709 = vpop.f32.mrf.mxu0
        %v1710 = vadd.f32 %v1691, %v1709
        %1711 = vdwg.mxu0
        %1712 = vxpose.xlu0.b32.start [1/16] %v1594, 128
        %1713 = vxpose.xlu0.b32.cont [2/16] %v1595, 128
        %1714 = vxpose.xlu0.b32.cont [3/16] %v1596, 128
        %1715 = vxpose.xlu0.b32.cont [4/16] %v1597, 128
        %1716 = vxpose.xlu0.b32.cont [5/16] %v1598, 128
        %1717 = vxpose.xlu0.b32.cont [6/16] %v1599, 128
        %1718 = vxpose.xlu0.b32.cont [7/16] %v1600, 128
        %1719 = vxpose.xlu0.b32.cont [8/16] %v1601, 128
        %1720 = vxpose.xlu0.b32.cont [9/16] %v1602, 128
        %1721 = vxpose.xlu0.b32.cont [10/16] %v1603, 128
        %1722 = vxpose.xlu0.b32.cont [11/16] %v1604, 128
        %1723 = vxpose.xlu0.b32.cont [12/16] %v1605, 128
        %1724 = vxpose.xlu0.b32.cont [13/16] %v1606, 128
        %1725 = vxpose.xlu0.b32.cont [14/16] %v1607, 128
        %1726 = vxpose.xlu0.b32.cont [15/16] %v1608, 128
        %1727 = vxpose.xlu0.b32.end [16/16] %v1609, 128
        %v1728 = vpop.trf.xlu0
        %v1729 = vpop.trf.xlu0
        %v1730 = vpop.trf.xlu0
        %v1731 = vpop.trf.xlu0
        %v1732 = vpop.trf.xlu0
        %v1733 = vpop.trf.xlu0
        %v1734 = vpop.trf.xlu0
        %v1735 = vpop.trf.xlu0
        %v1736 = vpop.trf.xlu0
        %v1737 = vpop.trf.xlu0
        %v1738 = vpop.trf.xlu0
        %v1739 = vpop.trf.xlu0
        %v1740 = vpop.trf.xlu0
        %v1741 = vpop.trf.xlu0
        %v1742 = vpop.trf.xlu0
        %v1743 = vpop.trf.xlu0
        %1744 = vxpose.xlu0.b32.start [1/16] %v1610, 128
        %1745 = vxpose.xlu0.b32.cont [2/16] %v1611, 128
        %1746 = vxpose.xlu0.b32.cont [3/16] %v1612, 128
        %1747 = vxpose.xlu0.b32.cont [4/16] %v1613, 128
        %1748 = vxpose.xlu0.b32.cont [5/16] %v1614, 128
        %1749 = vxpose.xlu0.b32.cont [6/16] %v1615, 128
        %1750 = vxpose.xlu0.b32.cont [7/16] %v1616, 128
        %1751 = vxpose.xlu0.b32.cont [8/16] %v1617, 128
        %1752 = vxpose.xlu0.b32.cont [9/16] %v1618, 128
        %1753 = vxpose.xlu0.b32.cont [10/16] %v1619, 128
        %1754 = vxpose.xlu0.b32.cont [11/16] %v1620, 128
        %1755 = vxpose.xlu0.b32.cont [12/16] %v1621, 128
        %1756 = vxpose.xlu0.b32.cont [13/16] %v1622, 128
        %1757 = vxpose.xlu0.b32.cont [14/16] %v1623, 128
        %1758 = vxpose.xlu0.b32.cont [15/16] %v1624, 128
        %1759 = vxpose.xlu0.b32.end [16/16] %v1625, 128
        %v1760 = vpop.trf.xlu0
        %v1761 = vpop.trf.xlu0
        %v1762 = vpop.trf.xlu0
        %v1763 = vpop.trf.xlu0
        %v1764 = vpop.trf.xlu0
        %v1765 = vpop.trf.xlu0
        %v1766 = vpop.trf.xlu0
        %v1767 = vpop.trf.xlu0
        %v1768 = vpop.trf.xlu0
        %v1769 = vpop.trf.xlu0
        %v1770 = vpop.trf.xlu0
        %v1771 = vpop.trf.xlu0
        %v1772 = vpop.trf.xlu0
        %v1773 = vpop.trf.xlu0
        %v1774 = vpop.trf.xlu0
        %v1775 = vpop.trf.xlu0
        %1776 = vmatpush.msra.mxu0 1.0
        %1777 = vmatpush.msra.mxu0 1.0
        %1778 = vmatpush.msra.mxu0 1.0
        %1779 = vmatpush.msra.mxu0 1.0
        %1780 = vmatpush.msra.mxu0 1.0
        %1781 = vmatpush.msra.mxu0 1.0
        %1782 = vmatpush.msra.mxu0 1.0
        %1783 = vmatpush.msra.mxu0 1.0
        %1784 = vmatpush.msra.mxu0 1.0
        %1785 = vmatpush.msra.mxu0 1.0
        %1786 = vmatpush.msra.mxu0 1.0
        %1787 = vmatpush.msra.mxu0 1.0
        %1788 = vmatpush.msra.mxu0 1.0
        %1789 = vmatpush.msra.mxu0 1.0
        %1790 = vmatpush.msra.mxu0 1.0
        %1791 = vmatpush.msra.mxu0 1.0
        %1792 = vmatmul.f32.gmra.mxu0 %v1728
        %v1793 = vpop.f32.mrf.mxu0
        %v1794 = vadd.f32 0.0, %v1793
        %1795 = vmatmul.f32.gmra.mxu0 %v1729
        %v1796 = vpop.f32.mrf.mxu0
        %v1797 = vadd.f32 0.0, %v1796
        %1798 = vmatmul.f32.gmra.mxu0 %v1730
        %v1799 = vpop.f32.mrf.mxu0
        %v1800 = vadd.f32 0.0, %v1799
        %1801 = vmatmul.f32.gmra.mxu0 %v1731
        %v1802 = vpop.f32.mrf.mxu0
        %v1803 = vadd.f32 0.0, %v1802
        %1804 = vdwg.mxu0
        %1805 = vmatpush.msra.mxu0 1.0
        %1806 = vmatpush.msra.mxu0 1.0
        %1807 = vmatpush.msra.mxu0 1.0
        %1808 = vmatpush.msra.mxu0 1.0
        %1809 = vmatpush.msra.mxu0 1.0
        %1810 = vmatpush.msra.mxu0 1.0
        %1811 = vmatpush.msra.mxu0 1.0
        %1812 = vmatpush.msra.mxu0 1.0
        %1813 = vmatpush.msra.mxu0 1.0
        %1814 = vmatpush.msra.mxu0 1.0
        %1815 = vmatpush.msra.mxu0 1.0
        %1816 = vmatpush.msra.mxu0 1.0
        %1817 = vmatpush.msra.mxu0 1.0
        %1818 = vmatpush.msra.mxu0 1.0
        %1819 = vmatpush.msra.mxu0 1.0
        %1820 = vmatpush.msra.mxu0 1.0
        %1821 = vmatmul.f32.gmra.mxu0 %v1760
        %v1822 = vpop.f32.mrf.mxu0
        %v1823 = vadd.f32 %v1794, %v1822
        %1824 = vmatmul.f32.gmra.mxu0 %v1761
        %v1825 = vpop.f32.mrf.mxu0
        %v1826 = vadd.f32 %v1797, %v1825
        %1827 = vmatmul.f32.gmra.mxu0 %v1762
        %v1828 = vpop.f32.mrf.mxu0
        %v1829 = vadd.f32 %v1800, %v1828
        %1830 = vmatmul.f32.gmra.mxu0 %v1763
        %v1831 = vpop.f32.mrf.mxu0
        %v1832 = vadd.f32 %v1803, %v1831
        %1833 = vdwg.mxu0
        %1835 = vset.pattern.permute.xlu0 0
        %1836 = vperm.xlu0 %1835, %v1823
        %v1837 = vpop.permute.xlu0 %1836
        %1840 = vset.pattern.permute.xlu0 0
        %1841 = vperm.xlu0 %1840, %v1826
        %v1842 = vpop.permute.xlu0 %1841
        %1845 = vset.pattern.permute.xlu0 0
        %1846 = vperm.xlu0 %1845, %v1829
        %v1847 = vpop.permute.xlu0 %1846
        %1850 = vset.pattern.permute.xlu0 0
        %1851 = vperm.xlu0 %1850, %v1832
        %v1852 = vpop.permute.xlu0 %1851
        %v1854 = vmul.f32 %v1837, %v946
        %v1855 = vmul.f32 %v1842, %v947
        %v1856 = vmul.f32 %v1847, %v948
        %v1857 = vmul.f32 %v1852, %v949
        %v1858 = vsub.f32 %v1703, %v1854
        %v1859 = vsub.f32 %v1705, %v1855
        %v1860 = vsub.f32 %v1708, %v1856
        %v1861 = vsub.f32 %v1710, %v1857
        %v1862 = vld [vmem:[#allocation11] sm:$0xff]
        %v1863 = vld [vmem:[#allocation11 + $0x8] sm:$0xff]
        %v1864 = vld [vmem:[#allocation11 + $0x10] sm:$0xff]
        %v1865 = vld [vmem:[#allocation11 + $0x18] sm:$0xff]
        %1867 = vset.pattern.permute.xlu0 0
        %1868 = vperm.xlu0 %1867, %v1862
        %v1869 = vpop.permute.xlu0 %1868
        %1872 = vset.pattern.permute.xlu0 0
        %1873 = vperm.xlu0 %1872, %v1863
        %v1874 = vpop.permute.xlu0 %1873
        %1877 = vset.pattern.permute.xlu0 0
        %1878 = vperm.xlu0 %1877, %v1864
        %v1879 = vpop.permute.xlu0 %1878
        %1882 = vset.pattern.permute.xlu0 0
        %1883 = vperm.xlu0 %1882, %v1865
        %v1884 = vpop.permute.xlu0 %1883
        %v1886 = vmul.f32 %v1858, %v1869
        %v1887 = vmul.f32 %v1859, %v1874
        %v1888 = vmul.f32 %v1860, %v1879
        %v1889 = vmul.f32 %v1861, %v1884
        %v1890 = vld [vmem:[#allocation13] sm:$0xff]
        %v1891 = vld [vmem:[#allocation13 + $0x8] sm:$0xff]
        %v1892 = vld [vmem:[#allocation13 + $0x10] sm:$0xff]
        %v1893 = vld [vmem:[#allocation13 + $0x18] sm:$0xff]
        %1895 = vset.pattern.permute.xlu0 0
        %1896 = vperm.xlu0 %1895, %v1890
        %v1897 = vpop.permute.xlu0 %1896
        %1900 = vset.pattern.permute.xlu0 0
        %1901 = vperm.xlu0 %1900, %v1891
        %v1902 = vpop.permute.xlu0 %1901
        %1905 = vset.pattern.permute.xlu0 0
        %1906 = vperm.xlu0 %1905, %v1892
        %v1907 = vpop.permute.xlu0 %1906
        %1910 = vset.pattern.permute.xlu0 0
        %1911 = vperm.xlu0 %1910, %v1893
        %v1912 = vpop.permute.xlu0 %1911
        %v1914 = vadd.f32 %v1886, %v1897
        %v1915 = vadd.f32 %v1887, %v1902
        %v1916 = vadd.f32 %v1888, %v1907
        %v1917 = vadd.f32 %v1889, %v1912
        %v1918 = vmax.f32 %v1914, 0.0
        %v1919 = vmax.f32 %v1915, 0.0
        %v1920 = vmax.f32 %v1916, 0.0
        %v1921 = vmax.f32 %v1917, 0.0
        %v1922 = vadd.f32 %v1918, %v1919
        %v1923 = vadd.f32 %v1922, %v1920
        %v1924 = vadd.f32 %v1923, %v1921
        %v1925 = vrot.slane %v1924, 4
        %v1926 = vadd.f32 %v1924, %v1925
        %v1927 = vrot.slane %v1926, 2
        %v1928 = vadd.f32 %v1926, %v1927
        %v1929 = vrot.slane %v1928, 1
        %v1930 = vadd.f32 %v1928, %v1929
        %v1931 = vrcp.pop 32.0
        %v1932 = vmul.f32 32.0, %v1931
        %v1933 = vsub.f32 1.0, %v1932
        %v1934 = vmul.f32 %v1931, %v1933
        %v1935 = vadd.f32 %v1931, %v1934
        %vm1936 = vweird.f32 %v1931
        %v1937 = vsel %vm1936, %v1931, %v1935
        %v1938 = vmul.f32 %v1930, %v1937
        %v1939 = vpack.c.bf16 %v1938, %v1938
        %v1940 = vld [vmem:[#allocation14] sm:$0xf]
        %v1941 = vld [vmem:[#allocation14 + $0x4] sm:$0xf]
        %v1942 = vld [vmem:[#allocation14 + $0x8] sm:$0xf]
        %v1943 = vld [vmem:[#allocation14 + $0xc] sm:$0xf]
        %v1944 = vld [vmem:[#allocation14 + $0x10] sm:$0xf]
        %v1945 = vld [vmem:[#allocation14 + $0x14] sm:$0xf]
        %v1946 = vld [vmem:[#allocation14 + $0x18] sm:$0xf]
        %v1947 = vld [vmem:[#allocation14 + $0x1c] sm:$0xf]
        %v1948 = vld [vmem:[#allocation14 + $0x20] sm:$0xf]
        %v1949 = vld [vmem:[#allocation14 + $0x24] sm:$0xf]
        %v1950 = vld [vmem:[#allocation14 + $0x28] sm:$0xf]
        %v1951 = vld [vmem:[#allocation14 + $0x2c] sm:$0xf]
        %v1952 = vld [vmem:[#allocation14 + $0x30] sm:$0xf]
        %v1953 = vld [vmem:[#allocation14 + $0x34] sm:$0xf]
        %v1954 = vld [vmem:[#allocation14 + $0x38] sm:$0xf]
        %v1955 = vld [vmem:[#allocation14 + $0x3c] sm:$0xf]
        %v1956 = vld [vmem:[%s10] sm:$0x1]
        %v1973 = vunpack.c.l.b16 %v1940
        %v1974 = vunpack.c.l.b16 %v1941
        %v1975 = vunpack.c.l.b16 %v1942
        %v1976 = vunpack.c.l.b16 %v1943
        %v1977 = vunpack.c.l.b16 %v1944
        %v1978 = vunpack.c.l.b16 %v1945
        %v1979 = vunpack.c.l.b16 %v1946
        %v1980 = vunpack.c.l.b16 %v1947
        %v1981 = vunpack.c.l.b16 %v1948
        %v1982 = vunpack.c.l.b16 %v1949
        %v1983 = vunpack.c.l.b16 %v1950
        %v1984 = vunpack.c.l.b16 %v1951
        %v1985 = vunpack.c.l.b16 %v1952
        %v1986 = vunpack.c.l.b16 %v1953
        %v1987 = vunpack.c.l.b16 %v1954
        %v1988 = vunpack.c.l.b16 %v1955
        %v1989 = vpack.c.b16 %v1974, %v1973
        %v1990 = vpack.c.b16 %v1976, %v1975
        %v1991 = vpack.c.b16 %v1978, %v1977
        %v1992 = vpack.c.b16 %v1980, %v1979
        %v1993 = vpack.c.b16 %v1982, %v1981
        %v1994 = vpack.c.b16 %v1984, %v1983
        %v1995 = vpack.c.b16 %v1986, %v1985
        %v1996 = vpack.c.b16 %v1988, %v1987
        %2005 = vmatpush.bf16.msra.mxu0 %v1996
        %2006 = vmatpush.bf16.msra.mxu0 %v1995
        %2007 = vmatpush.bf16.msra.mxu0 %v1994
        %2008 = vmatpush.bf16.msra.mxu0 %v1993
        %2009 = vmatpush.bf16.msra.mxu0 %v1992
        %2010 = vmatpush.bf16.msra.mxu0 %v1991
        %2011 = vmatpush.bf16.msra.mxu0 %v1990
        %2012 = vmatpush.bf16.msra.mxu0 %v1989
        %2013 = vmatmul.bf16.gmra.mxu0 %v1939
        %v2014 = vpop.f32.mrf.mxu0
        %v2015 = vadd.f32 %v1956, %v2014
        %v2016 = vpop.f32.mrf.mxu0
        %2017 = vdwg.mxu0
        %v2018 = vsub.f32 0.0, %v2015
        %v2019 = vmul.f32 %v2018, 1.442695
        %v2020 = vpow.pop %v2019
        %v2021 = vadd.f32 %v2020, 1.0
        %v2022 = vrcp.pop %v2021
        %v2023 = vadd.f32 %v2022, 1.0
        %2024 = vst [vmem:[%s623] sm:$0x1] %v2023
        %v2025 = vld [vmem:[#allocation16] sm:$0xf]
        %v2026 = vld [vmem:[#allocation16 + $0x4] sm:$0xf]
        %v2027 = vld [vmem:[#allocation16 + $0x8] sm:$0xf]
        %v2028 = vld [vmem:[#allocation16 + $0xc] sm:$0xf]
        %v2029 = vld [vmem:[#allocation16 + $0x10] sm:$0xf]
        %v2030 = vld [vmem:[#allocation16 + $0x14] sm:$0xf]
        %v2031 = vld [vmem:[#allocation16 + $0x18] sm:$0xf]
        %v2032 = vld [vmem:[#allocation16 + $0x1c] sm:$0xf]
        %v2033 = vld [vmem:[#allocation16 + $0x20] sm:$0xf]
        %v2034 = vld [vmem:[#allocation16 + $0x24] sm:$0xf]
        %v2035 = vld [vmem:[#allocation16 + $0x28] sm:$0xf]
        %v2036 = vld [vmem:[#allocation16 + $0x2c] sm:$0xf]
        %v2037 = vld [vmem:[#allocation16 + $0x30] sm:$0xf]
        %v2038 = vld [vmem:[#allocation16 + $0x34] sm:$0xf]
        %v2039 = vld [vmem:[#allocation16 + $0x38] sm:$0xf]
        %v2040 = vld [vmem:[#allocation16 + $0x3c] sm:$0xf]
        %v2041 = vld [vmem:[%s12] sm:$0x1]
        %v2058 = vunpack.c.l.b16 %v2025
        %v2059 = vunpack.c.l.b16 %v2026
        %v2060 = vunpack.c.l.b16 %v2027
        %v2061 = vunpack.c.l.b16 %v2028
        %v2062 = vunpack.c.l.b16 %v2029
        %v2063 = vunpack.c.l.b16 %v2030
        %v2064 = vunpack.c.l.b16 %v2031
        %v2065 = vunpack.c.l.b16 %v2032
        %v2066 = vunpack.c.l.b16 %v2033
        %v2067 = vunpack.c.l.b16 %v2034
        %v2068 = vunpack.c.l.b16 %v2035
        %v2069 = vunpack.c.l.b16 %v2036
        %v2070 = vunpack.c.l.b16 %v2037
        %v2071 = vunpack.c.l.b16 %v2038
        %v2072 = vunpack.c.l.b16 %v2039
        %v2073 = vunpack.c.l.b16 %v2040
        %v2074 = vpack.c.b16 %v2059, %v2058
        %v2075 = vpack.c.b16 %v2061, %v2060
        %v2076 = vpack.c.b16 %v2063, %v2062
        %v2077 = vpack.c.b16 %v2065, %v2064
        %v2078 = vpack.c.b16 %v2067, %v2066
        %v2079 = vpack.c.b16 %v2069, %v2068
        %v2080 = vpack.c.b16 %v2071, %v2070
        %v2081 = vpack.c.b16 %v2073, %v2072
        %2090 = vmatpush.bf16.msra.mxu0 %v2081
        %2091 = vmatpush.bf16.msra.mxu0 %v2080
        %2092 = vmatpush.bf16.msra.mxu0 %v2079
        %2093 = vmatpush.bf16.msra.mxu0 %v2078
        %2094 = vmatpush.bf16.msra.mxu0 %v2077
        %2095 = vmatpush.bf16.msra.mxu0 %v2076
        %2096 = vmatpush.bf16.msra.mxu0 %v2075
        %2097 = vmatpush.bf16.msra.mxu0 %v2074
        %2098 = vmatmul.bf16.gmra.mxu0 %v1939
        %v2099 = vpop.f32.mrf.mxu0
        %v2100 = vadd.f32 %v2041, %v2099
        %v2101 = vpop.f32.mrf.mxu0
        %2102 = vdwg.mxu0
        %2103 = vst [vmem:[%s620] sm:$0x1] %v2100
        %p2104 = scmp.lt.s32.totalorder %s36, 1
        %s2105 = scalar_select %p2104, %s36, 1
        %s2106 = scalar_lea.vmem %s13, %s2105
        %s2107 = sand.u32 %s348, 1
        %s2108 = scalar_lea.sflag [#allocation4], %s2107
        %s2109 = sand.u32 %s348, 1
        %s2110 = scalar_lea.vmem [#allocation17], %s2109
        // Predicated region
        $region109: #{enc_module_forward.2} parent=71 // pred_check
          %p2111 = pneg %p332
        $region110: #{enc_module_forward.2} parent=71 // pred_check_branch
          %2113 = sbr.rel (%p2111) target = $region112
        $region111: #{enc_module_forward.2} parent=71 // pred_region
          _
        $region112: #{enc_module_forward.2} parent=71 // pred_fallthru
          _
        // Predicated region
        $region113: #{enc_module_forward.2} parent=71 // pred_check
          %p2114 = pneg %p358
        $region114: #{enc_module_forward.2} parent=71 // pred_check_branch
          %2116 = sbr.rel (%p2114) target = $region116
        $region115: #{enc_module_forward.2} parent=71 // pred_region
          %2118 = vsyncadd %s2108, 0
          %s2119 = scalar_lea.hbm %s14, %s36
          %s2121 = sshll.u32 %s2110, 4
          %s2122 = int_to_ptr.vmem [resolvable:$true] %s2121
          %s2123 = sshll.u32 %s2119, 4
          %s2124 = int_to_ptr.hbm [resolvable:$true] %s2123
          %2126 = dma.vmem_to_hbm [thread:$0]  %s2122, 16, %s2124, %s2108
        $region116: #{enc_module_forward.2} parent=71 // pred_fallthru
          _
      $region72: #{enc_module_forward.2} parent=5 // pred_fallthru
        _
      %p2127 = scmp.le.s32.totalorder 2, %s31
      // Predicated region
      $region117: #{enc_module_forward.2} parent=5 // pred_check
        %p2128 = pneg %p2127
      $region118: #{enc_module_forward.2} parent=5 // pred_check_branch
        %2130 = sbr.rel (%p2128) target = $region120
      $region119: #{enc_module_forward.2} parent=5 // pred_region
        %s2131 = ssub.s32 %s31, 2
        // Predicated region
        $region121: #{enc_module_forward.2} parent=119 // pred_check
          %p2132 = pneg %p338
        $region122: #{enc_module_forward.2} parent=119 // pred_check_branch
          %2134 = sbr.rel (%p2132) target = $region124
        $region123: #{enc_module_forward.2} parent=119 // pred_region
          %p2135 = scmp.lt.s32.totalorder %s37, 1
          %s2136 = scalar_select %p2135, %s37, 1
          %s2137 = scalar_lea.vmem %s13, %s2136
        $region124: #{enc_module_forward.2} parent=119 // pred_fallthru
          _
        // Predicated region
        $region125: #{enc_module_forward.2} parent=119 // pred_check
          %p2138 = pneg %p364
        $region126: #{enc_module_forward.2} parent=119 // pred_check_branch
          %2140 = sbr.rel (%p2138) target = $region128
        $region127: #{enc_module_forward.2} parent=119 // pred_region
          %s2141 = sand.u32 %s349, 1
          %s2142 = scalar_lea.sflag [#allocation4], %s2141
          %s2143 = sand.u32 %s349, 1
          %s2144 = scalar_lea.vmem [#allocation17], %s2143
          %2146 = dma.done %s2142, 16
        $region128: #{enc_module_forward.2} parent=119 // pred_fallthru
          _
      $region120: #{enc_module_forward.2} parent=5 // pred_fallthru
        _
    $region6: #{enc_module_forward.2} parent=1 // loop_footer
      %s35 = sadd.s32 1, %s31
    $region7: #{enc_module_forward.2} parent=1 // loop_footer_branch
      %30 = sbr.rel target = $region3
    $region8: #{enc_module_forward.2} parent=1 // loop_exit
      _
    %2147 = vsyncpa [#allocation3], 1
    %s2148 = scalar_lea.sflag [#allocation3], 1
    %2149 = vsyncpa %s2148, 1
    %2150 = vsyncpa [#allocation6], 1
    %2151 = vsyncpa [#allocation9], 1
    %2152 = vsyncpa [#allocation12], 1
    %2153 = vsyncpa [#allocation15], 1
    %2154 = vsyncpa [#allocation4], 1
    %s2155 = scalar_lea.sflag [#allocation4], 1
    %2156 = vsyncpa %s2155, 1

</llo_original>
